<compile_context>
chip_gen: v7x
topology: tpu7x:2x2x1
jax: 0.10.0
libtpu: 0.0.40
codegen_flags: <defaults>
</compile_context>

<pallas_src>
import functools

import jax
import jax.numpy as jnp
from jax import lax
from jax.experimental import pallas as pl
from jax.experimental.pallas import tpu as pltpu


def _round_up(x: int, m: int) -> int:
    return ((x + m - 1) // m) * m


def ddpg_critic_kernel(xin_ref, wcat_ref, b1_ref, w2o_ref, b2_ref,
                       w3_ref, b3_ref, out_ref, *, h1p: int):
    f32, bf16 = jnp.float32, jnp.bfloat16

    # One fused matmul against the packed weight (bf16 MXU operands, f32 acc):
    #   cols [:h1p] = obs @ W1   (layer-1 pre-activation)
    #   cols [h1p:] = act @ W2a  (layer-2 action term)
    # The slices below sit on a lane-128 boundary, so they cost nothing.
    t = jnp.dot(xin_ref[...], wcat_ref[...], preferred_element_type=f32)

    # Layer 1: ReLU(obs @ W1 + b1)   (f32 VPU elementwise -- v5e safe).
    x = jnp.maximum(t[:, :h1p] + b1_ref[...], 0.0)

    # Layer 2: ReLU(x @ W2o + act @ W2a + b2)   (no concat materialized).
    h = jnp.dot(x.astype(bf16), w2o_ref[...], preferred_element_type=f32)
    h = jnp.maximum(h + t[:, h1p:] + b2_ref[...], 0.0)

    # Output layer (fan-out 1): w3_row . h^T -> (1, tm).  Batch lands on the
    # lane axis so the store is a full-width unmasked vst.
    q = lax.dot_general(w3_ref[...], h.astype(bf16),
                        (((1,), (1,)), ((), ())),
                        preferred_element_type=f32)
    out_ref[...] = q + b3_ref[0]          # b3 scalar read from SMEM


def ddpg_critic_forward(obs, action, params, *, tile_m: int = 4096):
    """obs: [B, obs_size], action: [B, act_size]  ->  [B, 1] float32.

    At small B (single grid step) wall time is pure pallas_call fixed cost;
    the right lever there is fusing more work per launch.
    # TODO(synk): add a multi-critic (online+target) fused entry point for the
    # grid==1 regime so the launch/pipeline prologue is amortized.
    """
    w1, b1, w2o, w2a, b2, w3, b3 = params
    B, obs_size = obs.shape
    act_size = action.shape[1]
    h1 = w1.shape[1]
    h2 = w2o.shape[1]
    h1p = _round_up(h1, 128)
    h2p = _round_up(h2, 128)
    feat = obs_size + act_size

    # ---- single fused bf16 input stream (one lane-padded array, not two). ---
    # One fused XLA pass (concat + cast); ideally emitted upstream as bf16.
    xin = jnp.concatenate([obs, action], axis=1).astype(jnp.bfloat16)

    # ---- packed / padded weights (trivial prep; pre-pack in production). ----
    wcat = jnp.zeros((feat, h1p + h2p), jnp.float32)
    wcat = wcat.at[:obs_size, :h1].set(w1.astype(jnp.float32))
    wcat = wcat.at[obs_size:, h1p:h1p + h2].set(w2a.astype(jnp.float32))
    wcat_b = wcat.astype(jnp.bfloat16)

    w2o_p = (jnp.zeros((h1p, h2p), jnp.float32)
             .at[:h1, :h2].set(w2o.astype(jnp.float32)).astype(jnp.bfloat16))
    b1_p = jnp.zeros((1, h1p), jnp.float32).at[:, :h1].set(b1.reshape(1, h1))
    b2_p = jnp.zeros((1, h2p), jnp.float32).at[:, :h2].set(b2.reshape(1, h2))
    w3_r = (jnp.zeros((1, h2p), jnp.float32)
            .at[:, :h2].set(w3.reshape(1, h2)).astype(jnp.bfloat16))
    b3_s = b3.reshape(1).astype(jnp.float32)

    # ---- batch tiling: big tiles, no wrapper pad, ragged last tile. ---------
    tm = _round_up(min(tile_m, _round_up(B, 128)), 128)
    grid_n = pl.cdiv(B, tm)
    b_pad = grid_n * tm            # only the tiny (1, b_pad) output is padded

    kernel = functools.partial(ddpg_critic_kernel, h1p=h1p)

    def stream_spec():             # per-tile batch rows (double-buffered)
        return pl.BlockSpec((tm, feat), lambda i: (i, 0))

    def const_spec(shape):         # VMEM-resident across the whole grid
        return pl.BlockSpec(shape, lambda i: (0, 0))

    def build(sem):
        return pl.pallas_call(
            kernel,
            out_shape=jax.ShapeDtypeStruct((1, b_pad), jnp.float32),
            grid=(grid_n,),
            in_specs=[
                stream_spec(),                                   # xin [tm, feat]
                const_spec((feat, h1p + h2p)),                   # Wcat
                const_spec((1, h1p)),                            # b1
                const_spec((h1p, h2p)),                          # W2o
                const_spec((1, h2p)),                            # b2
                const_spec((1, h2p)),                            # w3 row
                pl.BlockSpec(memory_space=pltpu.MemorySpace.SMEM),  # b3 scalar
            ],
            out_specs=pl.BlockSpec((1, tm), lambda i: (0, i)),   # lane-dense
            compiler_params=pltpu.CompilerParams(
                dimension_semantics=(sem,)),
        )

    args = (xin, wcat_b, b1_p, w2o_p, b2_p, w3_r, b3_s)
    try:
        # Real 2-TC sharding on v7x needs CORE_PARALLEL (plain "parallel" has
        # been measured not to change codegen).  Each grid step writes an
        # independent output tile, so any core partitioning is correct.
        out = build(pltpu.CORE_PARALLEL)(*args)
    except Exception:
        # Single-core chips / runtimes that reject core_parallel.
        out = build("parallel")(*args)

    return out.reshape(b_pad, 1)[:B]


def init_params(key, obs_size, act_size, hidden1=128, hidden2=128):
    """Torch-style Linear init (uniform +/- 1/sqrt(fan_in)), f32 master copies."""
    ks = jax.random.split(key, 6)

    def lin(kw, kb, fan_in, fan_out):
        bound = 1.0 / float(fan_in) ** 0.5
        w = jax.random.uniform(kw, (fan_in, fan_out), jnp.float32, -bound, bound)
        b = jax.random.uniform(kb, (1, fan_out), jnp.float32, -bound, bound)
        return w, b

    w1, b1 = lin(ks[0], ks[1], obs_size, hidden1)
    w2, b2 = lin(ks[2], ks[3], hidden1 + act_size, hidden2)
    w3, b3 = lin(ks[4], ks[5], hidden2, 1)
    # Split the second layer's weight so cat([x, a]) @ W2 == x@W2o + a@W2a.
    return (w1, b1, w2[:hidden1, :], w2[hidden1:, :], b2, w3, b3)


def reference_forward(obs, action, params):
    """Pure-JAX reference mirroring the kernel's mixed precision
    (bf16 MXU operands, f32 accumulation / elementwise)."""
    w1, b1, w2o, w2a, b2, w3, b3 = params
    f32, bf16 = jnp.float32, jnp.bfloat16
    ob = obs.astype(bf16)
    ac = action.astype(bf16)
    x = jnp.maximum(jnp.dot(ob, w1.astype(bf16), preferred_element_type=f32)
                    + b1.reshape(1, -1), 0.0)
    h = jnp.maximum(jnp.dot(x.astype(bf16), w2o.astype(bf16),
                            preferred_element_type=f32)
                    + jnp.dot(ac, w2a.astype(bf16), preferred_element_type=f32)
                    + b2.reshape(1, -1), 0.0)
    hb = h.astype(bf16).astype(f32)
    w3b = w3.astype(bf16).astype(f32).reshape(1, -1)
    return jnp.sum(hb * w3b, axis=-1, keepdims=True) + b3.reshape(1, 1)


if __name__ == "__main__":
    key = jax.random.PRNGKey(0)
    k_obs, k_act, k_params = jax.random.split(key, 3)

    # Small shapes: batch 200 exercises the ragged-last-tile path (no wrapper
    # pad anymore), obs/act sizes are MuJoCo-ish, hidden sizes are the module
    # defaults (128, 128).
    batch, obs_size, act_size = 200, 17, 6
    hidden1, hidden2 = 128, 128

    obs = jax.random.normal(k_obs, (batch, obs_size), jnp.float32)
    action = jax.random.normal(k_act, (batch, act_size), jnp.float32)
    params = init_params(k_params, obs_size, act_size, hidden1, hidden2)

    out = jax.block_until_ready(ddpg_critic_forward(obs, action, params))
    ref = reference_forward(obs, action, params)

    assert out.shape == (batch, 1), out.shape
    max_err = float(jnp.max(jnp.abs(out - ref)))
    assert jnp.allclose(out, ref, atol=1e-4, rtol=1e-3), max_err
    print("KERNEL_OK")
</pallas_src>

<mosaic_0001>
module attributes {stable_mosaic.version = 11 : i64} {
  func.func @ddpg_critic_kernel(%arg0: i32, %arg1: memref<256x23xbf16, #tpu.memory_space<vmem>>, %arg2: memref<23x256xbf16, #tpu.memory_space<vmem>>, %arg3: memref<1x128xf32, #tpu.memory_space<vmem>>, %arg4: memref<128x128xbf16, #tpu.memory_space<vmem>>, %arg5: memref<1x128xf32, #tpu.memory_space<vmem>>, %arg6: memref<1x128xbf16, #tpu.memory_space<vmem>>, %arg7: memref<1xf32, #tpu.memory_space<smem>>, %arg8: memref<1x256xf32, #tpu.memory_space<vmem>>) attributes {dimension_semantics = [#tpu.dimension_semantics<core_parallel>], iteration_bounds = array<i64: 1>, scalar_prefetch = 0 : i64, scratch_operands = 0 : i64, tpu.core_type = #tpu.core_type<tc>, window_params = [{transform_indices = @transform_0, window_bounds = array<i64: 256, 23>}, {pipeline_mode = #tpu.pipeline_mode<synchronous>, transform_indices = @transform_1, window_bounds = array<i64: 23, 256>}, {pipeline_mode = #tpu.pipeline_mode<synchronous>, transform_indices = @transform_2, window_bounds = array<i64: 1, 128>}, {pipeline_mode = #tpu.pipeline_mode<synchronous>, transform_indices = @transform_3, window_bounds = array<i64: 128, 128>}, {pipeline_mode = #tpu.pipeline_mode<synchronous>, transform_indices = @transform_4, window_bounds = array<i64: 1, 128>}, {pipeline_mode = #tpu.pipeline_mode<synchronous>, transform_indices = @transform_5, window_bounds = array<i64: 1, 128>}, {transform_indices = @transform_6, window_bounds = array<i64: 1>}, {transform_indices = @transform_7, window_bounds = array<i64: 1, 256>}]} {
    %c0 = arith.constant 0 : index
    %c0_0 = arith.constant 0 : index
    %0 = vector.load %arg1[%c0, %c0_0] : memref<256x23xbf16, #tpu.memory_space<vmem>>, vector<256x23xbf16>
    %c0_1 = arith.constant 0 : index
    %c0_2 = arith.constant 0 : index
    %1 = vector.load %arg2[%c0_1, %c0_2] : memref<23x256xbf16, #tpu.memory_space<vmem>>, vector<23x256xbf16>
    %cst = arith.constant dense<0.000000e+00> : vector<256x256xf32>
    %2 = tpu.matmul %0, %1, %cst {dimension_numbers = #tpu.dot_dimension_numbers<[1], [0], [0], [1], [0, 0, 1, 1], [], []>} : vector<256x23xbf16>, vector<23x256xbf16>, vector<256x256xf32> -> vector<256x256xf32>
    %3 = vector.extract_strided_slice %2 {offsets = [0, 0], sizes = [256, 128], strides = [1, 1]} : vector<256x256xf32> to vector<256x128xf32>
    %c0_3 = arith.constant 0 : index
    %c0_4 = arith.constant 0 : index
    %4 = vector.load %arg3[%c0_3, %c0_4] : memref<1x128xf32, #tpu.memory_space<vmem>>, vector<1x128xf32>
    %5 = vector.broadcast %4 : vector<1x128xf32> to vector<256x128xf32>
    %6 = arith.addf %3, %5 : vector<256x128xf32>
    %cst_5 = arith.constant 0.000000e+00 : f32
    %7 = vector.broadcast %cst_5 : f32 to vector<256x128xf32>
    %8 = arith.maximumf %6, %7 : vector<256x128xf32>
    %9 = arith.truncf %8 : vector<256x128xf32> to vector<256x128xbf16>
    %c0_6 = arith.constant 0 : index
    %c0_7 = arith.constant 0 : index
    %10 = vector.load %arg4[%c0_6, %c0_7] : memref<128x128xbf16, #tpu.memory_space<vmem>>, vector<128x128xbf16>
    %cst_8 = arith.constant dense<0.000000e+00> : vector<256x128xf32>
    %11 = tpu.matmul %9, %10, %cst_8 {dimension_numbers = #tpu.dot_dimension_numbers<[1], [0], [0], [1], [0, 0, 1, 1], [], []>} : vector<256x128xbf16>, vector<128x128xbf16>, vector<256x128xf32> -> vector<256x128xf32>
    %12 = vector.extract_strided_slice %2 {offsets = [0, 128], sizes = [256, 128], strides = [1, 1]} : vector<256x256xf32> to vector<256x128xf32>
    %13 = arith.addf %11, %12 : vector<256x128xf32>
    %c0_9 = arith.constant 0 : index
    %c0_10 = arith.constant 0 : index
    %14 = vector.load %arg5[%c0_9, %c0_10] : memref<1x128xf32, #tpu.memory_space<vmem>>, vector<1x128xf32>
    %15 = vector.broadcast %14 : vector<1x128xf32> to vector<256x128xf32>
    %16 = arith.addf %13, %15 : vector<256x128xf32>
    %cst_11 = arith.constant 0.000000e+00 : f32
    %17 = vector.broadcast %cst_11 : f32 to vector<256x128xf32>
    %18 = arith.maximumf %16, %17 : vector<256x128xf32>
    %c0_12 = arith.constant 0 : index
    %c0_13 = arith.constant 0 : index
    %19 = vector.load %arg6[%c0_12, %c0_13] : memref<1x128xbf16, #tpu.memory_space<vmem>>, vector<1x128xbf16>
    %20 = arith.truncf %18 : vector<256x128xf32> to vector<256x128xbf16>
    %cst_14 = arith.constant dense<0.000000e+00> : vector<1x256xf32>
    %21 = tpu.matmul %19, %20, %cst_14 {dimension_numbers = #tpu.dot_dimension_numbers<[1], [1], [0], [0], [0, 0, 1, 0], [], []>} : vector<1x128xbf16>, vector<256x128xbf16>, vector<1x256xf32> -> vector<1x256xf32>
    %c0_15 = arith.constant 0 : index
    %22 = memref.load %arg7[%c0_15] : memref<1xf32, #tpu.memory_space<smem>>
    %23 = vector.broadcast %22 : f32 to vector<1x256xf32>
    %24 = arith.addf %21, %23 : vector<1x256xf32>
    %c0_16 = arith.constant 0 : index
    %c0_17 = arith.constant 0 : index
    %25 = vector.load %arg8[%c0_16, %c0_17] : memref<1x256xf32, #tpu.memory_space<vmem>>, vector<1x256xf32>
    tpu.vector_store %arg8[%c0_16, %c0_17], %24 {strides = array<i32>} : memref<1x256xf32, #tpu.memory_space<vmem>>, vector<1x256xf32>,
    return
  }
  func.func @transform_0(%arg0: i32) -> (i32, i32) {
    %c0_i32 = arith.constant 0 : i32
    %c0_i32_0 = arith.constant 0 : i32
    return %arg0, %c0_i32 : i32, i32
  }
  func.func @transform_1(%arg0: i32) -> (i32, i32) {
    %c0_i32 = arith.constant 0 : i32
    %c0_i32_0 = arith.constant 0 : i32
    %c0_i32_1 = arith.constant 0 : i32
    return %c0_i32, %c0_i32_0 : i32, i32
  }
  func.func @transform_2(%arg0: i32) -> (i32, i32) {
    %c0_i32 = arith.constant 0 : i32
    %c0_i32_0 = arith.constant 0 : i32
    %c0_i32_1 = arith.constant 0 : i32
    return %c0_i32, %c0_i32_0 : i32, i32
  }
  func.func @transform_3(%arg0: i32) -> (i32, i32) {
    %c0_i32 = arith.constant 0 : i32
    %c0_i32_0 = arith.constant 0 : i32
    %c0_i32_1 = arith.constant 0 : i32
    return %c0_i32, %c0_i32_0 : i32, i32
  }
  func.func @transform_4(%arg0: i32) -> (i32, i32) {
    %c0_i32 = arith.constant 0 : i32
    %c0_i32_0 = arith.constant 0 : i32
    %c0_i32_1 = arith.constant 0 : i32
    return %c0_i32, %c0_i32_0 : i32, i32
  }
  func.func @transform_5(%arg0: i32) -> (i32, i32) {
    %c0_i32 = arith.constant 0 : i32
    %c0_i32_0 = arith.constant 0 : i32
    %c0_i32_1 = arith.constant 0 : i32
    return %c0_i32, %c0_i32_0 : i32, i32
  }
  func.func @transform_6(%arg0: i32) -> i32 {
    %c0_i32 = arith.constant 0 : i32
    %c0_i32_0 = arith.constant 0 : i32
    return %c0_i32 : i32
  }
  func.func @transform_7(%arg0: i32) -> (i32, i32) {
    %c0_i32 = arith.constant 0 : i32
    %c0_i32_0 = arith.constant 0 : i32
    return %c0_i32, %arg0 : i32, i32
  }
}

module attributes {stable_mosaic.version = 11 : i64} {
  func.func @ddpg_critic_kernel(%arg0: i32, %arg1: memref<256x23xbf16, #tpu.memory_space<vmem>>, %arg2: memref<23x256xbf16, #tpu.memory_space<vmem>>, %arg3: memref<1x128xf32, #tpu.memory_space<vmem>>, %arg4: memref<128x128xbf16, #tpu.memory_space<vmem>>, %arg5: memref<1x128xf32, #tpu.memory_space<vmem>>, %arg6: memref<1x128xbf16, #tpu.memory_space<vmem>>, %arg7: memref<1xf32, #tpu.memory_space<smem>>, %arg8: memref<1x256xf32, #tpu.memory_space<vmem>>) attributes {dimension_semantics = [#tpu.dimension_semantics<parallel>], iteration_bounds = array<i64: 1>, scalar_prefetch = 0 : i64, scratch_operands = 0 : i64, tpu.core_type = #tpu.core_type<tc>, window_params = [{transform_indices = @transform_0, window_bounds = array<i64: 256, 23>}, {pipeline_mode = #tpu.pipeline_mode<synchronous>, transform_indices = @transform_1, window_bounds = array<i64: 23, 256>}, {pipeline_mode = #tpu.pipeline_mode<synchronous>, transform_indices = @transform_2, window_bounds = array<i64: 1, 128>}, {pipeline_mode = #tpu.pipeline_mode<synchronous>, transform_indices = @transform_3, window_bounds = array<i64: 128, 128>}, {pipeline_mode = #tpu.pipeline_mode<synchronous>, transform_indices = @transform_4, window_bounds = array<i64: 1, 128>}, {pipeline_mode = #tpu.pipeline_mode<synchronous>, transform_indices = @transform_5, window_bounds = array<i64: 1, 128>}, {transform_indices = @transform_6, window_bounds = array<i64: 1>}, {transform_indices = @transform_7, window_bounds = array<i64: 1, 256>}]} {
    %c0 = arith.constant 0 : index
    %c0_0 = arith.constant 0 : index
    %0 = vector.load %arg1[%c0, %c0_0] : memref<256x23xbf16, #tpu.memory_space<vmem>>, vector<256x23xbf16>
    %c0_1 = arith.constant 0 : index
    %c0_2 = arith.constant 0 : index
    %1 = vector.load %arg2[%c0_1, %c0_2] : memref<23x256xbf16, #tpu.memory_space<vmem>>, vector<23x256xbf16>
    %cst = arith.constant dense<0.000000e+00> : vector<256x256xf32>
    %2 = tpu.matmul %0, %1, %cst {dimension_numbers = #tpu.dot_dimension_numbers<[1], [0], [0], [1], [0, 0, 1, 1], [], []>} : vector<256x23xbf16>, vector<23x256xbf16>, vector<256x256xf32> -> vector<256x256xf32>
    %3 = vector.extract_strided_slice %2 {offsets = [0, 0], sizes = [256, 128], strides = [1, 1]} : vector<256x256xf32> to vector<256x128xf32>
    %c0_3 = arith.constant 0 : index
    %c0_4 = arith.constant 0 : index
    %4 = vector.load %arg3[%c0_3, %c0_4] : memref<1x128xf32, #tpu.memory_space<vmem>>, vector<1x128xf32>
    %5 = vector.broadcast %4 : vector<1x128xf32> to vector<256x128xf32>
    %6 = arith.addf %3, %5 : vector<256x128xf32>
    %cst_5 = arith.constant 0.000000e+00 : f32
    %7 = vector.broadcast %cst_5 : f32 to vector<256x128xf32>
    %8 = arith.maximumf %6, %7 : vector<256x128xf32>
    %9 = arith.truncf %8 : vector<256x128xf32> to vector<256x128xbf16>
    %c0_6 = arith.constant 0 : index
    %c0_7 = arith.constant 0 : index
    %10 = vector.load %arg4[%c0_6, %c0_7] : memref<128x128xbf16, #tpu.memory_space<vmem>>, vector<128x128xbf16>
    %cst_8 = arith.constant dense<0.000000e+00> : vector<256x128xf32>
    %11 = tpu.matmul %9, %10, %cst_8 {dimension_numbers = #tpu.dot_dimension_numbers<[1], [0], [0], [1], [0, 0, 1, 1], [], []>} : vector<256x128xbf16>, vector<128x128xbf16>, vector<256x128xf32> -> vector<256x128xf32>
    %12 = vector.extract_strided_slice %2 {offsets = [0, 128], sizes = [256, 128], strides = [1, 1]} : vector<256x256xf32> to vector<256x128xf32>
    %13 = arith.addf %11, %12 : vector<256x128xf32>
    %c0_9 = arith.constant 0 : index
    %c0_10 = arith.constant 0 : index
    %14 = vector.load %arg5[%c0_9, %c0_10] : memref<1x128xf32, #tpu.memory_space<vmem>>, vector<1x128xf32>
    %15 = vector.broadcast %14 : vector<1x128xf32> to vector<256x128xf32>
    %16 = arith.addf %13, %15 : vector<256x128xf32>
    %cst_11 = arith.constant 0.000000e+00 : f32
    %17 = vector.broadcast %cst_11 : f32 to vector<256x128xf32>
    %18 = arith.maximumf %16, %17 : vector<256x128xf32>
    %c0_12 = arith.constant 0 : index
    %c0_13 = arith.constant 0 : index
    %19 = vector.load %arg6[%c0_12, %c0_13] : memref<1x128xbf16, #tpu.memory_space<vmem>>, vector<1x128xbf16>
    %20 = arith.truncf %18 : vector<256x128xf32> to vector<256x128xbf16>
    %cst_14 = arith.constant dense<0.000000e+00> : vector<1x256xf32>
    %21 = tpu.matmul %19, %20, %cst_14 {dimension_numbers = #tpu.dot_dimension_numbers<[1], [1], [0], [0], [0, 0, 1, 0], [], []>} : vector<1x128xbf16>, vector<256x128xbf16>, vector<1x256xf32> -> vector<1x256xf32>
    %c0_15 = arith.constant 0 : index
    %22 = memref.load %arg7[%c0_15] : memref<1xf32, #tpu.memory_space<smem>>
    %23 = vector.broadcast %22 : f32 to vector<1x256xf32>
    %24 = arith.addf %21, %23 : vector<1x256xf32>
    %c0_16 = arith.constant 0 : index
    %c0_17 = arith.constant 0 : index
    %25 = vector.load %arg8[%c0_16, %c0_17] : memref<1x256xf32, #tpu.memory_space<vmem>>, vector<1x256xf32>
    tpu.vector_store %arg8[%c0_16, %c0_17], %24 {strides = array<i32>} : memref<1x256xf32, #tpu.memory_space<vmem>>, vector<1x256xf32>,
    return
  }
  func.func @transform_0(%arg0: i32) -> (i32, i32) {
    %c0_i32 = arith.constant 0 : i32
    %c0_i32_0 = arith.constant 0 : i32
    return %arg0, %c0_i32 : i32, i32
  }
  func.func @transform_1(%arg0: i32) -> (i32, i32) {
    %c0_i32 = arith.constant 0 : i32
    %c0_i32_0 = arith.constant 0 : i32
    %c0_i32_1 = arith.constant 0 : i32
    return %c0_i32, %c0_i32_0 : i32, i32
  }
  func.func @transform_2(%arg0: i32) -> (i32, i32) {
    %c0_i32 = arith.constant 0 : i32
    %c0_i32_0 = arith.constant 0 : i32
    %c0_i32_1 = arith.constant 0 : i32
    return %c0_i32, %c0_i32_0 : i32, i32
  }
  func.func @transform_3(%arg0: i32) -> (i32, i32) {
    %c0_i32 = arith.constant 0 : i32
    %c0_i32_0 = arith.constant 0 : i32
    %c0_i32_1 = arith.constant 0 : i32
    return %c0_i32, %c0_i32_0 : i32, i32
  }
  func.func @transform_4(%arg0: i32) -> (i32, i32) {
    %c0_i32 = arith.constant 0 : i32
    %c0_i32_0 = arith.constant 0 : i32
    %c0_i32_1 = arith.constant 0 : i32
    return %c0_i32, %c0_i32_0 : i32, i32
  }
  func.func @transform_5(%arg0: i32) -> (i32, i32) {
    %c0_i32 = arith.constant 0 : i32
    %c0_i32_0 = arith.constant 0 : i32
    %c0_i32_1 = arith.constant 0 : i32
    return %c0_i32, %c0_i32_0 : i32, i32
  }
  func.func @transform_6(%arg0: i32) -> i32 {
    %c0_i32 = arith.constant 0 : i32
    %c0_i32_0 = arith.constant 0 : i32
    return %c0_i32 : i32
  }
  func.func @transform_7(%arg0: i32) -> (i32, i32) {
    %c0_i32 = arith.constant 0 : i32
    %c0_i32_0 = arith.constant 0 : i32
    return %c0_i32, %arg0 : i32, i32
  }
}

</mosaic_0001>

<llo_original>
// kernel: tpu_custom_call.1
$region0: #{tpu_custom_call.1}
  #allocation0 [shape = 'u32[]', space=smem, size = 0x4, offset = 0x4, fixed_abs, tag = 'smem constant byte address 0x4 - core index']
  #allocation1 [shape = 'u32[144,128]{1,0:T(1,128)}', space=vmem, size = 0x12000, scoped, tag = 'internal scratch']
  #allocation2 [shape = 'f32[1]{0:T(128)S(6)}', space=smem, size = 0x200, scoped, tag = 'scoped memory for tpu_custom_call.1']
  %s0 = inlined_call_operand.vmem [shape: bf16[200,23], index: 0, kind: input, shape index: {}]
  %s1 = inlined_call_operand.vmem [shape: bf16[23,256], index: 1, kind: input, shape index: {}]
  %s2 = inlined_call_operand.vmem [shape: f32[1,128], index: 2, kind: input, shape index: {}]
  %s3 = inlined_call_operand.vmem [shape: bf16[128,128], index: 3, kind: input, shape index: {}]
  %s4 = inlined_call_operand.vmem [shape: f32[1,128], index: 4, kind: input, shape index: {}]
  %s5 = inlined_call_operand.vmem [shape: bf16[1,128], index: 5, kind: input, shape index: {}]
  %s6 = inlined_call_operand.<no memory space> [shape: f32[1], index: 6, kind: input, shape index: {}]
  %s7 = inlined_call_operand.hbm [shape: f32[1,256], index: 7, kind: output, shape index: {}]
  %s8 = sld [smem:[#allocation0]]
  $region38: #{tpu_custom_call.1} parent=0
    _
  %s10 = ssub.s32 1, %s8
  %s11 = scalar_select 0, %s10, %s8
  %12 = sst [smem:[#allocation2]] %s6
  $region1: #{tpu_custom_call.1} parent=0
    #allocation3 [shape = 'u8[1024]{0}', space=vmem, size = 0x400, scoped, tag = 'output window, operand 0, single buffered']
    #allocation4 [shape = 's32[1]{0}', space=sflag, size = 0x4, scoped, tag = 'scoped memory for tpu_custom_call.1']
    %13 = vsyncpa [#allocation4], 0
    // Predicated region
    $region2: #{tpu_custom_call.1} parent=1 // pred_check
      _
    $region3: #{tpu_custom_call.1} parent=1 // pred_check_branch
      %15 = sbr.rel (0) target = $region5
    $region4: #{tpu_custom_call.1} parent=1 // pred_region
      %s16 = smul.u32 32, %s11
      %s17 = ssub.s32 25, %s16
      %s18 = smul.u32 64, %s17
      %p19 = scmp.lt.s32.totalorder %s16, 24
      %s20 = scalar_select %p19, %s16, 24
      %s21 = smul.addr %s20, 4
      %s22 = scalar_lea.vmem %s0, %s21
      %s23 = smul.u32 32, %s11
      %s24 = ssub.s32 25, %s23
      %s25 = smul.u32 64, %s24
    $region5: #{tpu_custom_call.1} parent=1 // pred_fallthru
      _
    // Predicated region
    $region6: #{tpu_custom_call.1} parent=1 // pred_check
      _
    $region7: #{tpu_custom_call.1} parent=1 // pred_check_branch
      %27 = sbr.rel (0) target = $region9
    $region8: #{tpu_custom_call.1} parent=1 // pred_region
      _
    $region9: #{tpu_custom_call.1} parent=1 // pred_fallthru
      _
    // Predicated region
    $region10: #{tpu_custom_call.1} parent=1 // pred_check
      _
    $region11: #{tpu_custom_call.1} parent=1 // pred_check_branch
      %29 = sbr.rel (0) target = $region13
    $region12: #{tpu_custom_call.1} parent=1 // pred_region
      _
    $region13: #{tpu_custom_call.1} parent=1 // pred_fallthru
      _
    // Predicated region
    $region14: #{tpu_custom_call.1} parent=1 // pred_check
      _
    $region15: #{tpu_custom_call.1} parent=1 // pred_check_branch
      %31 = sbr.rel (0) target = $region17
    $region16: #{tpu_custom_call.1} parent=1 // pred_region
      _
    $region17: #{tpu_custom_call.1} parent=1 // pred_fallthru
      _
    // Predicated region
    $region18: #{tpu_custom_call.1} parent=1 // pred_check
      _
    $region19: #{tpu_custom_call.1} parent=1 // pred_check_branch
      %33 = sbr.rel (0) target = $region21
    $region20: #{tpu_custom_call.1} parent=1 // pred_region
      _
    $region21: #{tpu_custom_call.1} parent=1 // pred_fallthru
      _
    // Predicated region
    $region22: #{tpu_custom_call.1} parent=1 // pred_check
      _
    $region23: #{tpu_custom_call.1} parent=1 // pred_check_branch
      %35 = sbr.rel (0) target = $region25
    $region24: #{tpu_custom_call.1} parent=1 // pred_region
      _
    $region25: #{tpu_custom_call.1} parent=1 // pred_fallthru
      _
    // Predicated region
    $region26: #{tpu_custom_call.1} parent=1 // pred_check
      _
    $region27: #{tpu_custom_call.1} parent=1 // pred_check_branch
      %37 = sbr.rel (0) target = $region29
    $region28: #{tpu_custom_call.1} parent=1 // pred_region
      _
    $region29: #{tpu_custom_call.1} parent=1 // pred_fallthru
      _
    %s38 = smul.u32 32, %s11
    %s39 = ssub.s32 25, %s38
    %s40 = smul.u32 64, %s39
    %p41 = scmp.lt.s32.totalorder %s38, 24
    %s42 = scalar_select %p41, %s38, 24
    %s43 = smul.addr %s42, 4
    %s44 = scalar_lea.vmem %s0, %s43
    %s45 = smul.u32 32, %s11
    %s46 = ssub.s32 25, %s45
    %s47 = smul.u32 64, %s46
    %p48 = scmp.lt.s32.totalorder %s45, 24
    %s49 = scalar_select %p48, %s45, 24
    %s50 = smul.addr %s49, 4
    %s51 = scalar_lea.vmem %s0, %s50
    %s52 = smul.u32 32, %s11
    %s53 = ssub.s32 25, %s52
    %s54 = smul.u32 64, %s53
    %s55 = smul.u32 2, %s11
    %v57 = vld [vmem:[%s51] sm:$0xf]
    %v58 = vld [vmem:[%s51 + $0x4] sm:$0xf]
    %v59 = vld [vmem:[%s51 + $0x8] sm:$0xf]
    %v60 = vld [vmem:[%s51 + $0xc] sm:$0xf]
    %v61 = vld [vmem:[%s51 + $0x10] sm:$0xf]
    %v62 = vld [vmem:[%s51 + $0x14] sm:$0xf]
    %v63 = vld [vmem:[%s51 + $0x18] sm:$0xf]
    %v64 = vld [vmem:[%s51 + $0x1c] sm:$0xf]
    %v65 = vld [vmem:[%s51 + $0x20] sm:$0xf]
    %v66 = vld [vmem:[%s51 + $0x24] sm:$0xf]
    %v67 = vld [vmem:[%s51 + $0x28] sm:$0xf]
    %v68 = vld [vmem:[%s51 + $0x2c] sm:$0xf]
    %v69 = vld [vmem:[%s51 + $0x30] sm:$0xf]
    %v70 = vld [vmem:[%s51 + $0x34] sm:$0xf]
    %v71 = vld [vmem:[%s51 + $0x38] sm:$0xf]
    %v72 = vld [vmem:[%s51 + $0x3c] sm:$0xf]
    %v73 = vld [vmem:[%s51 + $0x40] sm:$0xf]
    %v74 = vld [vmem:[%s51 + $0x44] sm:$0xf]
    %v75 = vld [vmem:[%s51 + $0x48] sm:$0xf]
    %v76 = vld [vmem:[%s51 + $0x4c] sm:$0xf]
    %v77 = vld [vmem:[%s51 + $0x50] sm:$0xf]
    %v78 = vld [vmem:[%s51 + $0x54] sm:$0xf]
    %v79 = vld [vmem:[%s51 + $0x58] sm:$0xf]
    %v80 = vld [vmem:[%s51 + $0x5c] sm:$0xf]
    %v81 = vld [vmem:[%s51 + $0x60] sm:$0xf]
    %v82 = vld [vmem:[%s51 + $0x64] sm:$0xf]
    %v83 = vld [vmem:[%s51 + $0x68] sm:$0xf]
    %v84 = vld [vmem:[%s51 + $0x6c] sm:$0xf]
    %v85 = vld [vmem:[%s51 + $0x70] sm:$0xf]
    %v86 = vld [vmem:[%s51 + $0x74] sm:$0xf]
    %v87 = vld [vmem:[%s51 + $0x78] sm:$0xf]
    %v88 = vld [vmem:[%s51 + $0x7c] sm:$0xf]
    %v89 = vld [vmem:[%s1] sm:$0xff]
    %v90 = vld [vmem:[%s1 + $0x8] sm:$0xff]
    %v91 = vld [vmem:[%s1 + $0x10] sm:$0xff]
    %v124 = vunpack.c.l.b16 %v57
    %v125 = vunpack.c.l.b16 %v58
    %v126 = vunpack.c.l.b16 %v59
    %v127 = vunpack.c.l.b16 %v60
    %v128 = vunpack.c.l.b16 %v61
    %v129 = vunpack.c.l.b16 %v62
    %v130 = vunpack.c.l.b16 %v63
    %v131 = vunpack.c.l.b16 %v64
    %v132 = vunpack.c.l.b16 %v65
    %v133 = vunpack.c.l.b16 %v66
    %v134 = vunpack.c.l.b16 %v67
    %v135 = vunpack.c.l.b16 %v68
    %v136 = vunpack.c.l.b16 %v69
    %v137 = vunpack.c.l.b16 %v70
    %v138 = vunpack.c.l.b16 %v71
    %v139 = vunpack.c.l.b16 %v72
    %v140 = vunpack.c.l.b16 %v73
    %v141 = vunpack.c.l.b16 %v74
    %v142 = vunpack.c.l.b16 %v75
    %v143 = vunpack.c.l.b16 %v76
    %v144 = vunpack.c.l.b16 %v77
    %v145 = vunpack.c.l.b16 %v78
    %v146 = vunpack.c.l.b16 %v79
    %v147 = vunpack.c.l.b16 %v80
    %v148 = vunpack.c.l.b16 %v81
    %v149 = vunpack.c.l.b16 %v82
    %v150 = vunpack.c.l.b16 %v83
    %v151 = vunpack.c.l.b16 %v84
    %v152 = vunpack.c.l.b16 %v85
    %v153 = vunpack.c.l.b16 %v86
    %v154 = vunpack.c.l.b16 %v87
    %v155 = vunpack.c.l.b16 %v88
    %v156 = vpack.c.b16 %v125, %v124
    %v157 = vpack.c.b16 %v127, %v126
    %v158 = vpack.c.b16 %v129, %v128
    %v159 = vpack.c.b16 %v131, %v130
    %v160 = vpack.c.b16 %v133, %v132
    %v161 = vpack.c.b16 %v135, %v134
    %v162 = vpack.c.b16 %v137, %v136
    %v163 = vpack.c.b16 %v139, %v138
    %v164 = vpack.c.b16 %v141, %v140
    %v165 = vpack.c.b16 %v143, %v142
    %v166 = vpack.c.b16 %v145, %v144
    %v167 = vpack.c.b16 %v147, %v146
    %v168 = vpack.c.b16 %v149, %v148
    %v169 = vpack.c.b16 %v151, %v150
    %v170 = vpack.c.b16 %v153, %v152
    %v171 = vpack.c.b16 %v155, %v154
    %v175 = vunpack.c.l.b16 %v89
    %v176 = vunpack.c.h.b16 %v89
    %v177 = vunpack.c.l.b16 %v90
    %v178 = vunpack.c.h.b16 %v90
    %v179 = vunpack.c.l.b16 %v91
    %v180 = vunpack.c.h.b16 %v91
    %v181 = vpack.c.b16 %v177, %v175
    %v182 = vpack.c.b16 %v178, %v176
    %v183 = vpack.c.b16 %v179, %v179
    %v184 = vpack.c.b16 %v180, %v180
    %vm187 = vcmask 187392
    %v189 = vsel %vm187, %v156, 0
    %v192 = vsel %vm187, %v157, 0
    %v195 = vsel %vm187, %v158, 0
    %v198 = vsel %vm187, %v159, 0
    %v201 = vsel %vm187, %v160, 0
    %v204 = vsel %vm187, %v161, 0
    %v207 = vsel %vm187, %v162, 0
    %v210 = vsel %vm187, %v163, 0
    %v213 = vsel %vm187, %v164, 0
    %v216 = vsel %vm187, %v165, 0
    %v219 = vsel %vm187, %v166, 0
    %v222 = vsel %vm187, %v167, 0
    %v225 = vsel %vm187, %v168, 0
    %v228 = vsel %vm187, %v169, 0
    %v231 = vsel %vm187, %v170, 0
    %v234 = vsel %vm187, %v171, 0
    %vm236 = vcmask 1042432
    %vm237 = vcmask 1043456
    %v238 = vsel %vm236, 4294967295, 65535
    %v239 = vsel %vm237, %v238, 0
    %v241 = vand.u32 %v183, %v239
    %v244 = vand.u32 %v184, %v239
    %246 = vmatprep.subr.bf16.mxu0 %v182
    %247 = vmatpush1.bf16.msra.mxu0 %v181
    %248 = vmatprep.subr.bf16.mxu0 %v244
    %249 = vmatpush1.bf16.msra.mxu0 %v241
    %250 = vmatprep.subr.bf16.mxu0 0
    %251 = vmatpush1.bf16.msra.mxu0 0
    %252 = vmatprep.subr.bf16.mxu0 0
    %253 = vmatpush1.bf16.msra.mxu0 0
    %254 = vmatprep.subr.bf16.mxu0 0
    %255 = vmatpush1.bf16.msra.mxu0 0
    %256 = vmatprep.subr.bf16.mxu0 0
    %257 = vmatpush1.bf16.msra.mxu0 0
    %258 = vmatprep.subr.bf16.mxu0 0
    %259 = vmatpush1.bf16.msra.mxu0 0
    %260 = vmatprep.subr.bf16.mxu0 0
    %261 = vmatpush1.bf16.msra.mxu0 0
    %262 = vmatprep.subr.bf16.mxu0 0
    %263 = vmatpush1.bf16.msra.mxu0 0
    %264 = vmatprep.subr.bf16.mxu0 0
    %265 = vmatpush1.bf16.msra.mxu0 0
    %266 = vmatprep.subr.bf16.mxu0 0
    %267 = vmatpush1.bf16.msra.mxu0 0
    %268 = vmatprep.subr.bf16.mxu0 0
    %269 = vmatpush1.bf16.msra.mxu0 0
    %270 = vmatprep.subr.bf16.mxu0 0
    %271 = vmatpush1.bf16.msra.mxu0 0
    %272 = vmatprep.subr.bf16.mxu0 0
    %273 = vmatpush1.bf16.msra.mxu0 0
    %274 = vmatprep.subr.bf16.mxu0 0
    %275 = vmatpush1.bf16.msra.mxu0 0
    %276 = vmatprep.subr.bf16.mxu0 0
    %277 = vmatpush1.bf16.msra.mxu0 0
    %278 = vmatprep.mubr.bf16.mxu0 0
    %279 = vmatmul.mubr.bf16.gmra.mrb[0].mxu0 %v189
    %v280 = vpop.f32.mrb[0].mxu0
    %v281 = vadd.f32 0.0, %v280
    %v282 = vpop.f32.mrb[0].mxu0
    %v283 = vadd.f32 0.0, %v282
    %v284 = vpop.f32.mrb[0].mxu0
    %v285 = vadd.f32 0.0, %v284
    %v286 = vpop.f32.mrb[0].mxu0
    %v287 = vadd.f32 0.0, %v286
    %288 = vmatprep.mubr.bf16.mxu0 0
    %289 = vmatmul.mubr.bf16.gmra.mrb[0].mxu0 %v192
    %v290 = vpop.f32.mrb[0].mxu0
    %v291 = vadd.f32 0.0, %v290
    %v292 = vpop.f32.mrb[0].mxu0
    %v293 = vadd.f32 0.0, %v292
    %v294 = vpop.f32.mrb[0].mxu0
    %v295 = vadd.f32 0.0, %v294
    %v296 = vpop.f32.mrb[0].mxu0
    %v297 = vadd.f32 0.0, %v296
    %298 = vmatprep.mubr.bf16.mxu0 0
    %299 = vmatmul.mubr.bf16.gmra.mrb[0].mxu0 %v195
    %v300 = vpop.f32.mrb[0].mxu0
    %v301 = vadd.f32 0.0, %v300
    %v302 = vpop.f32.mrb[0].mxu0
    %v303 = vadd.f32 0.0, %v302
    %v304 = vpop.f32.mrb[0].mxu0
    %v305 = vadd.f32 0.0, %v304
    %v306 = vpop.f32.mrb[0].mxu0
    %v307 = vadd.f32 0.0, %v306
    %308 = vmatprep.mubr.bf16.mxu0 0
    %309 = vmatmul.mubr.bf16.gmra.mrb[0].mxu0 %v198
    %v310 = vpop.f32.mrb[0].mxu0
    %v311 = vadd.f32 0.0, %v310
    %v312 = vpop.f32.mrb[0].mxu0
    %v313 = vadd.f32 0.0, %v312
    %v314 = vpop.f32.mrb[0].mxu0
    %v315 = vadd.f32 0.0, %v314
    %v316 = vpop.f32.mrb[0].mxu0
    %v317 = vadd.f32 0.0, %v316
    %318 = vmatprep.mubr.bf16.mxu0 0
    %319 = vmatmul.mubr.bf16.gmra.mrb[0].mxu0 %v201
    %v320 = vpop.f32.mrb[0].mxu0
    %v321 = vadd.f32 0.0, %v320
    %v322 = vpop.f32.mrb[0].mxu0
    %v323 = vadd.f32 0.0, %v322
    %v324 = vpop.f32.mrb[0].mxu0
    %v325 = vadd.f32 0.0, %v324
    %v326 = vpop.f32.mrb[0].mxu0
    %v327 = vadd.f32 0.0, %v326
    %328 = vmatprep.mubr.bf16.mxu0 0
    %329 = vmatmul.mubr.bf16.gmra.mrb[0].mxu0 %v204
    %v330 = vpop.f32.mrb[0].mxu0
    %v331 = vadd.f32 0.0, %v330
    %v332 = vpop.f32.mrb[0].mxu0
    %v333 = vadd.f32 0.0, %v332
    %v334 = vpop.f32.mrb[0].mxu0
    %v335 = vadd.f32 0.0, %v334
    %v336 = vpop.f32.mrb[0].mxu0
    %v337 = vadd.f32 0.0, %v336
    %338 = vmatprep.mubr.bf16.mxu0 0
    %339 = vmatmul.mubr.bf16.gmra.mrb[0].mxu0 %v207
    %v340 = vpop.f32.mrb[0].mxu0
    %v341 = vadd.f32 0.0, %v340
    %v342 = vpop.f32.mrb[0].mxu0
    %v343 = vadd.f32 0.0, %v342
    %v344 = vpop.f32.mrb[0].mxu0
    %v345 = vadd.f32 0.0, %v344
    %v346 = vpop.f32.mrb[0].mxu0
    %v347 = vadd.f32 0.0, %v346
    %348 = vmatprep.mubr.bf16.mxu0 0
    %349 = vmatmul.mubr.bf16.gmra.mrb[0].mxu0 %v210
    %v350 = vpop.f32.mrb[0].mxu0
    %v351 = vadd.f32 0.0, %v350
    %v352 = vpop.f32.mrb[0].mxu0
    %v353 = vadd.f32 0.0, %v352
    %v354 = vpop.f32.mrb[0].mxu0
    %v355 = vadd.f32 0.0, %v354
    %v356 = vpop.f32.mrb[0].mxu0
    %v357 = vadd.f32 0.0, %v356
    %358 = vmatprep.mubr.bf16.mxu0 0
    %359 = vmatmul.mubr.bf16.gmra.mrb[0].mxu0 %v213
    %v360 = vpop.f32.mrb[0].mxu0
    %v361 = vadd.f32 0.0, %v360
    %v362 = vpop.f32.mrb[0].mxu0
    %v363 = vadd.f32 0.0, %v362
    %v364 = vpop.f32.mrb[0].mxu0
    %v365 = vadd.f32 0.0, %v364
    %v366 = vpop.f32.mrb[0].mxu0
    %v367 = vadd.f32 0.0, %v366
    %368 = vmatprep.mubr.bf16.mxu0 0
    %369 = vmatmul.mubr.bf16.gmra.mrb[0].mxu0 %v216
    %v370 = vpop.f32.mrb[0].mxu0
    %v371 = vadd.f32 0.0, %v370
    %v372 = vpop.f32.mrb[0].mxu0
    %v373 = vadd.f32 0.0, %v372
    %v374 = vpop.f32.mrb[0].mxu0
    %v375 = vadd.f32 0.0, %v374
    %v376 = vpop.f32.mrb[0].mxu0
    %v377 = vadd.f32 0.0, %v376
    %378 = vmatprep.mubr.bf16.mxu0 0
    %379 = vmatmul.mubr.bf16.gmra.mrb[0].mxu0 %v219
    %v380 = vpop.f32.mrb[0].mxu0
    %v381 = vadd.f32 0.0, %v380
    %v382 = vpop.f32.mrb[0].mxu0
    %v383 = vadd.f32 0.0, %v382
    %v384 = vpop.f32.mrb[0].mxu0
    %v385 = vadd.f32 0.0, %v384
    %v386 = vpop.f32.mrb[0].mxu0
    %v387 = vadd.f32 0.0, %v386
    %388 = vmatprep.mubr.bf16.mxu0 0
    %389 = vmatmul.mubr.bf16.gmra.mrb[0].mxu0 %v222
    %v390 = vpop.f32.mrb[0].mxu0
    %v391 = vadd.f32 0.0, %v390
    %v392 = vpop.f32.mrb[0].mxu0
    %v393 = vadd.f32 0.0, %v392
    %v394 = vpop.f32.mrb[0].mxu0
    %v395 = vadd.f32 0.0, %v394
    %v396 = vpop.f32.mrb[0].mxu0
    %v397 = vadd.f32 0.0, %v396
    %398 = vmatprep.mubr.bf16.mxu0 0
    %399 = vmatmul.mubr.bf16.gmra.mrb[0].mxu0 %v225
    %v400 = vpop.f32.mrb[0].mxu0
    %v401 = vadd.f32 0.0, %v400
    %v402 = vpop.f32.mrb[0].mxu0
    %v403 = vadd.f32 0.0, %v402
    %v404 = vpop.f32.mrb[0].mxu0
    %v405 = vadd.f32 0.0, %v404
    %v406 = vpop.f32.mrb[0].mxu0
    %v407 = vadd.f32 0.0, %v406
    %408 = vmatprep.mubr.bf16.mxu0 0
    %409 = vmatmul.mubr.bf16.gmra.mrb[0].mxu0 %v228
    %v410 = vpop.f32.mrb[0].mxu0
    %v411 = vadd.f32 0.0, %v410
    %v412 = vpop.f32.mrb[0].mxu0
    %v413 = vadd.f32 0.0, %v412
    %v414 = vpop.f32.mrb[0].mxu0
    %v415 = vadd.f32 0.0, %v414
    %v416 = vpop.f32.mrb[0].mxu0
    %v417 = vadd.f32 0.0, %v416
    %418 = vmatprep.mubr.bf16.mxu0 0
    %419 = vmatmul.mubr.bf16.gmra.mrb[0].mxu0 %v231
    %v420 = vpop.f32.mrb[0].mxu0
    %v421 = vadd.f32 0.0, %v420
    %v422 = vpop.f32.mrb[0].mxu0
    %v423 = vadd.f32 0.0, %v422
    %v424 = vpop.f32.mrb[0].mxu0
    %v425 = vadd.f32 0.0, %v424
    %v426 = vpop.f32.mrb[0].mxu0
    %v427 = vadd.f32 0.0, %v426
    %428 = vmatprep.mubr.bf16.mxu0 0
    %429 = vmatmul.mubr.bf16.gmra.mrb[0].mxu0 %v234
    %v430 = vpop.f32.mrb[0].mxu0
    %v431 = vadd.f32 0.0, %v430
    %v432 = vpop.f32.mrb[0].mxu0
    %v433 = vadd.f32 0.0, %v432
    %v434 = vpop.f32.mrb[0].mxu0
    %v435 = vadd.f32 0.0, %v434
    %v436 = vpop.f32.mrb[0].mxu0
    %v437 = vadd.f32 0.0, %v436
    %438 = vdwg.mxu0
    %v439 = vld [vmem:[%s2] sm:$0x1]
    %v441 = vlaneseq
    %v442 = vshrl.u32 %v441, 7
    %v443 = vsub.s32 0, %v442
    %v444 = vrot.slane %v439, %v443
    %v446 = vadd.f32 %v281, %v444
    %v447 = vadd.f32 %v285, %v444
    %v448 = vadd.f32 %v291, %v444
    %v449 = vadd.f32 %v295, %v444
    %v450 = vadd.f32 %v301, %v444
    %v451 = vadd.f32 %v305, %v444
    %v452 = vadd.f32 %v311, %v444
    %v453 = vadd.f32 %v315, %v444
    %v454 = vadd.f32 %v321, %v444
    %v455 = vadd.f32 %v325, %v444
    %v456 = vadd.f32 %v331, %v444
    %v457 = vadd.f32 %v335, %v444
    %v458 = vadd.f32 %v341, %v444
    %v459 = vadd.f32 %v345, %v444
    %v460 = vadd.f32 %v351, %v444
    %v461 = vadd.f32 %v355, %v444
    %v462 = vadd.f32 %v361, %v444
    %v463 = vadd.f32 %v365, %v444
    %v464 = vadd.f32 %v371, %v444
    %v465 = vadd.f32 %v375, %v444
    %v466 = vadd.f32 %v381, %v444
    %v467 = vadd.f32 %v385, %v444
    %v468 = vadd.f32 %v391, %v444
    %v469 = vadd.f32 %v395, %v444
    %v470 = vadd.f32 %v401, %v444
    %v471 = vadd.f32 %v405, %v444
    %v472 = vadd.f32 %v411, %v444
    %v473 = vadd.f32 %v415, %v444
    %v474 = vadd.f32 %v421, %v444
    %v475 = vadd.f32 %v425, %v444
    %v476 = vadd.f32 %v431, %v444
    %v477 = vadd.f32 %v435, %v444
    %v478 = vmax.f32 %v446, 0.0
    %v479 = vmax.f32 %v447, 0.0
    %v480 = vmax.f32 %v448, 0.0
    %v481 = vmax.f32 %v449, 0.0
    %v482 = vmax.f32 %v450, 0.0
    %v483 = vmax.f32 %v451, 0.0
    %v484 = vmax.f32 %v452, 0.0
    %v485 = vmax.f32 %v453, 0.0
    %v486 = vmax.f32 %v454, 0.0
    %v487 = vmax.f32 %v455, 0.0
    %v488 = vmax.f32 %v456, 0.0
    %v489 = vmax.f32 %v457, 0.0
    %v490 = vmax.f32 %v458, 0.0
    %v491 = vmax.f32 %v459, 0.0
    %v492 = vmax.f32 %v460, 0.0
    %v493 = vmax.f32 %v461, 0.0
    %v494 = vmax.f32 %v462, 0.0
    %v495 = vmax.f32 %v463, 0.0
    %v496 = vmax.f32 %v464, 0.0
    %v497 = vmax.f32 %v465, 0.0
    %v498 = vmax.f32 %v466, 0.0
    %v499 = vmax.f32 %v467, 0.0
    %v500 = vmax.f32 %v468, 0.0
    %v501 = vmax.f32 %v469, 0.0
    %v502 = vmax.f32 %v470, 0.0
    %v503 = vmax.f32 %v471, 0.0
    %v504 = vmax.f32 %v472, 0.0
    %v505 = vmax.f32 %v473, 0.0
    %v506 = vmax.f32 %v474, 0.0
    %v507 = vmax.f32 %v475, 0.0
    %v508 = vmax.f32 %v476, 0.0
    %v509 = vmax.f32 %v477, 0.0
    %v510 = vpack.c.bf16 %v479, %v478
    %v511 = vpack.c.bf16 %v481, %v480
    %v512 = vpack.c.bf16 %v483, %v482
    %v513 = vpack.c.bf16 %v485, %v484
    %v514 = vpack.c.bf16 %v487, %v486
    %v515 = vpack.c.bf16 %v489, %v488
    %v516 = vpack.c.bf16 %v491, %v490
    %v517 = vpack.c.bf16 %v493, %v492
    %v518 = vpack.c.bf16 %v495, %v494
    %v519 = vpack.c.bf16 %v497, %v496
    %v520 = vpack.c.bf16 %v499, %v498
    %v521 = vpack.c.bf16 %v501, %v500
    %v522 = vpack.c.bf16 %v503, %v502
    %v523 = vpack.c.bf16 %v505, %v504
    %v524 = vpack.c.bf16 %v507, %v506
    %v525 = vpack.c.bf16 %v509, %v508
    %v526 = vld [vmem:[%s3] sm:$0xf]
    %v527 = vld [vmem:[%s3 + $0x4] sm:$0xf]
    %v528 = vld [vmem:[%s3 + $0x8] sm:$0xf]
    %v529 = vld [vmem:[%s3 + $0xc] sm:$0xf]
    %v530 = vld [vmem:[%s3 + $0x10] sm:$0xf]
    %v531 = vld [vmem:[%s3 + $0x14] sm:$0xf]
    %v532 = vld [vmem:[%s3 + $0x18] sm:$0xf]
    %v533 = vld [vmem:[%s3 + $0x1c] sm:$0xf]
    %v534 = vld [vmem:[%s3 + $0x20] sm:$0xf]
    %v535 = vld [vmem:[%s3 + $0x24] sm:$0xf]
    %v536 = vld [vmem:[%s3 + $0x28] sm:$0xf]
    %v537 = vld [vmem:[%s3 + $0x2c] sm:$0xf]
    %v538 = vld [vmem:[%s3 + $0x30] sm:$0xf]
    %v539 = vld [vmem:[%s3 + $0x34] sm:$0xf]
    %v540 = vld [vmem:[%s3 + $0x38] sm:$0xf]
    %v541 = vld [vmem:[%s3 + $0x3c] sm:$0xf]
    %v558 = vunpack.c.l.b16 %v526
    %v559 = vunpack.c.l.b16 %v527
    %v560 = vunpack.c.l.b16 %v528
    %v561 = vunpack.c.l.b16 %v529
    %v562 = vunpack.c.l.b16 %v530
    %v563 = vunpack.c.l.b16 %v531
    %v564 = vunpack.c.l.b16 %v532
    %v565 = vunpack.c.l.b16 %v533
    %v566 = vunpack.c.l.b16 %v534
    %v567 = vunpack.c.l.b16 %v535
    %v568 = vunpack.c.l.b16 %v536
    %v569 = vunpack.c.l.b16 %v537
    %v570 = vunpack.c.l.b16 %v538
    %v571 = vunpack.c.l.b16 %v539
    %v572 = vunpack.c.l.b16 %v540
    %v573 = vunpack.c.l.b16 %v541
    %v574 = vpack.c.b16 %v559, %v558
    %v575 = vpack.c.b16 %v561, %v560
    %v576 = vpack.c.b16 %v563, %v562
    %v577 = vpack.c.b16 %v565, %v564
    %v578 = vpack.c.b16 %v567, %v566
    %v579 = vpack.c.b16 %v569, %v568
    %v580 = vpack.c.b16 %v571, %v570
    %v581 = vpack.c.b16 %v573, %v572
    %590 = vmatprep.subr.bf16.mxu0 0
    %591 = vmatpush1.bf16.msra.mxu0 %v574
    %592 = vmatprep.subr.bf16.mxu0 0
    %593 = vmatpush1.bf16.msra.mxu0 %v575
    %594 = vmatprep.subr.bf16.mxu0 0
    %595 = vmatpush1.bf16.msra.mxu0 %v576
    %596 = vmatprep.subr.bf16.mxu0 0
    %597 = vmatpush1.bf16.msra.mxu0 %v577
    %598 = vmatprep.subr.bf16.mxu0 0
    %599 = vmatpush1.bf16.msra.mxu0 %v578
    %600 = vmatprep.subr.bf16.mxu0 0
    %601 = vmatpush1.bf16.msra.mxu0 %v579
    %602 = vmatprep.subr.bf16.mxu0 0
    %603 = vmatpush1.bf16.msra.mxu0 %v580
    %604 = vmatprep.subr.bf16.mxu0 0
    %605 = vmatpush1.bf16.msra.mxu0 %v581
    %606 = vmatprep.subr.bf16.mxu0 0
    %607 = vmatpush1.bf16.msra.mxu0 0
    %608 = vmatprep.subr.bf16.mxu0 0
    %609 = vmatpush1.bf16.msra.mxu0 0
    %610 = vmatprep.subr.bf16.mxu0 0
    %611 = vmatpush1.bf16.msra.mxu0 0
    %612 = vmatprep.subr.bf16.mxu0 0
    %613 = vmatpush1.bf16.msra.mxu0 0
    %614 = vmatprep.subr.bf16.mxu0 0
    %615 = vmatpush1.bf16.msra.mxu0 0
    %616 = vmatprep.subr.bf16.mxu0 0
    %617 = vmatpush1.bf16.msra.mxu0 0
    %618 = vmatprep.subr.bf16.mxu0 0
    %619 = vmatpush1.bf16.msra.mxu0 0
    %620 = vmatprep.subr.bf16.mxu0 0
    %621 = vmatpush1.bf16.msra.mxu0 0
    %622 = vmatprep.mubr.bf16.mxu0 0
    %623 = vmatmul.mubr.bf16.gmra.mrb[0].mxu0 %v510
    %v624 = vpop.f32.mrb[0].mxu0
    %v625 = vadd.f32 %v283, %v624
    %v626 = vpop.f32.mrb[0].mxu0
    %v627 = vpop.f32.mrb[0].mxu0
    %v628 = vadd.f32 %v287, %v627
    %v629 = vpop.f32.mrb[0].mxu0
    %630 = vmatprep.mubr.bf16.mxu0 0
    %631 = vmatmul.mubr.bf16.gmra.mrb[0].mxu0 %v511
    %v632 = vpop.f32.mrb[0].mxu0
    %v633 = vadd.f32 %v293, %v632
    %v634 = vpop.f32.mrb[0].mxu0
    %v635 = vpop.f32.mrb[0].mxu0
    %v636 = vadd.f32 %v297, %v635
    %v637 = vpop.f32.mrb[0].mxu0
    %638 = vmatprep.mubr.bf16.mxu0 0
    %639 = vmatmul.mubr.bf16.gmra.mrb[0].mxu0 %v512
    %v640 = vpop.f32.mrb[0].mxu0
    %v641 = vadd.f32 %v303, %v640
    %v642 = vpop.f32.mrb[0].mxu0
    %v643 = vpop.f32.mrb[0].mxu0
    %v644 = vadd.f32 %v307, %v643
    %v645 = vpop.f32.mrb[0].mxu0
    %646 = vmatprep.mubr.bf16.mxu0 0
    %647 = vmatmul.mubr.bf16.gmra.mrb[0].mxu0 %v513
    %v648 = vpop.f32.mrb[0].mxu0
    %v649 = vadd.f32 %v313, %v648
    %v650 = vpop.f32.mrb[0].mxu0
    %v651 = vpop.f32.mrb[0].mxu0
    %v652 = vadd.f32 %v317, %v651
    %v653 = vpop.f32.mrb[0].mxu0
    %654 = vmatprep.mubr.bf16.mxu0 0
    %655 = vmatmul.mubr.bf16.gmra.mrb[0].mxu0 %v514
    %v656 = vpop.f32.mrb[0].mxu0
    %v657 = vadd.f32 %v323, %v656
    %v658 = vpop.f32.mrb[0].mxu0
    %v659 = vpop.f32.mrb[0].mxu0
    %v660 = vadd.f32 %v327, %v659
    %v661 = vpop.f32.mrb[0].mxu0
    %662 = vmatprep.mubr.bf16.mxu0 0
    %663 = vmatmul.mubr.bf16.gmra.mrb[0].mxu0 %v515
    %v664 = vpop.f32.mrb[0].mxu0
    %v665 = vadd.f32 %v333, %v664
    %v666 = vpop.f32.mrb[0].mxu0
    %v667 = vpop.f32.mrb[0].mxu0
    %v668 = vadd.f32 %v337, %v667
    %v669 = vpop.f32.mrb[0].mxu0
    %670 = vmatprep.mubr.bf16.mxu0 0
    %671 = vmatmul.mubr.bf16.gmra.mrb[0].mxu0 %v516
    %v672 = vpop.f32.mrb[0].mxu0
    %v673 = vadd.f32 %v343, %v672
    %v674 = vpop.f32.mrb[0].mxu0
    %v675 = vpop.f32.mrb[0].mxu0
    %v676 = vadd.f32 %v347, %v675
    %v677 = vpop.f32.mrb[0].mxu0
    %678 = vmatprep.mubr.bf16.mxu0 0
    %679 = vmatmul.mubr.bf16.gmra.mrb[0].mxu0 %v517
    %v680 = vpop.f32.mrb[0].mxu0
    %v681 = vadd.f32 %v353, %v680
    %v682 = vpop.f32.mrb[0].mxu0
    %v683 = vpop.f32.mrb[0].mxu0
    %v684 = vadd.f32 %v357, %v683
    %v685 = vpop.f32.mrb[0].mxu0
    %686 = vmatprep.mubr.bf16.mxu0 0
    %687 = vmatmul.mubr.bf16.gmra.mrb[0].mxu0 %v518
    %v688 = vpop.f32.mrb[0].mxu0
    %v689 = vadd.f32 %v363, %v688
    %v690 = vpop.f32.mrb[0].mxu0
    %v691 = vpop.f32.mrb[0].mxu0
    %v692 = vadd.f32 %v367, %v691
    %v693 = vpop.f32.mrb[0].mxu0
    %694 = vmatprep.mubr.bf16.mxu0 0
    %695 = vmatmul.mubr.bf16.gmra.mrb[0].mxu0 %v519
    %v696 = vpop.f32.mrb[0].mxu0
    %v697 = vadd.f32 %v373, %v696
    %v698 = vpop.f32.mrb[0].mxu0
    %v699 = vpop.f32.mrb[0].mxu0
    %v700 = vadd.f32 %v377, %v699
    %v701 = vpop.f32.mrb[0].mxu0
    %702 = vmatprep.mubr.bf16.mxu0 0
    %703 = vmatmul.mubr.bf16.gmra.mrb[0].mxu0 %v520
    %v704 = vpop.f32.mrb[0].mxu0
    %v705 = vadd.f32 %v383, %v704
    %v706 = vpop.f32.mrb[0].mxu0
    %v707 = vpop.f32.mrb[0].mxu0
    %v708 = vadd.f32 %v387, %v707
    %v709 = vpop.f32.mrb[0].mxu0
    %710 = vmatprep.mubr.bf16.mxu0 0
    %711 = vmatmul.mubr.bf16.gmra.mrb[0].mxu0 %v521
    %v712 = vpop.f32.mrb[0].mxu0
    %v713 = vadd.f32 %v393, %v712
    %v714 = vpop.f32.mrb[0].mxu0
    %v715 = vpop.f32.mrb[0].mxu0
    %v716 = vadd.f32 %v397, %v715
    %v717 = vpop.f32.mrb[0].mxu0
    %718 = vmatprep.mubr.bf16.mxu0 0
    %719 = vmatmul.mubr.bf16.gmra.mrb[0].mxu0 %v522
    %v720 = vpop.f32.mrb[0].mxu0
    %v721 = vadd.f32 %v403, %v720
    %v722 = vpop.f32.mrb[0].mxu0
    %v723 = vpop.f32.mrb[0].mxu0
    %v724 = vadd.f32 %v407, %v723
    %v725 = vpop.f32.mrb[0].mxu0
    %726 = vmatprep.mubr.bf16.mxu0 0
    %727 = vmatmul.mubr.bf16.gmra.mrb[0].mxu0 %v523
    %v728 = vpop.f32.mrb[0].mxu0
    %v729 = vadd.f32 %v413, %v728
    %v730 = vpop.f32.mrb[0].mxu0
    %v731 = vpop.f32.mrb[0].mxu0
    %v732 = vadd.f32 %v417, %v731
    %v733 = vpop.f32.mrb[0].mxu0
    %734 = vmatprep.mubr.bf16.mxu0 0
    %735 = vmatmul.mubr.bf16.gmra.mrb[0].mxu0 %v524
    %v736 = vpop.f32.mrb[0].mxu0
    %v737 = vadd.f32 %v423, %v736
    %v738 = vpop.f32.mrb[0].mxu0
    %v739 = vpop.f32.mrb[0].mxu0
    %v740 = vadd.f32 %v427, %v739
    %v741 = vpop.f32.mrb[0].mxu0
    %742 = vmatprep.mubr.bf16.mxu0 0
    %743 = vmatmul.mubr.bf16.gmra.mrb[0].mxu0 %v525
    %v744 = vpop.f32.mrb[0].mxu0
    %v745 = vadd.f32 %v433, %v744
    %v746 = vpop.f32.mrb[0].mxu0
    %v747 = vpop.f32.mrb[0].mxu0
    %v748 = vadd.f32 %v437, %v747
    %v749 = vpop.f32.mrb[0].mxu0
    %750 = vdwg.mxu0
    %v751 = vld [vmem:[%s4] sm:$0x1]
    %v753 = vlaneseq
    %v754 = vshrl.u32 %v753, 7
    %v755 = vsub.s32 0, %v754
    %v756 = vrot.slane %v751, %v755
    %v758 = vadd.f32 %v625, %v756
    %v759 = vadd.f32 %v628, %v756
    %v760 = vadd.f32 %v633, %v756
    %v761 = vadd.f32 %v636, %v756
    %v762 = vadd.f32 %v641, %v756
    %v763 = vadd.f32 %v644, %v756
    %v764 = vadd.f32 %v649, %v756
    %v765 = vadd.f32 %v652, %v756
    %v766 = vadd.f32 %v657, %v756
    %v767 = vadd.f32 %v660, %v756
    %v768 = vadd.f32 %v665, %v756
    %v769 = vadd.f32 %v668, %v756
    %v770 = vadd.f32 %v673, %v756
    %v771 = vadd.f32 %v676, %v756
    %v772 = vadd.f32 %v681, %v756
    %v773 = vadd.f32 %v684, %v756
    %v774 = vadd.f32 %v689, %v756
    %v775 = vadd.f32 %v692, %v756
    %v776 = vadd.f32 %v697, %v756
    %v777 = vadd.f32 %v700, %v756
    %v778 = vadd.f32 %v705, %v756
    %v779 = vadd.f32 %v708, %v756
    %v780 = vadd.f32 %v713, %v756
    %v781 = vadd.f32 %v716, %v756
    %v782 = vadd.f32 %v721, %v756
    %v783 = vadd.f32 %v724, %v756
    %v784 = vadd.f32 %v729, %v756
    %v785 = vadd.f32 %v732, %v756
    %v786 = vadd.f32 %v737, %v756
    %v787 = vadd.f32 %v740, %v756
    %v788 = vadd.f32 %v745, %v756
    %v789 = vadd.f32 %v748, %v756
    %v790 = vmax.f32 %v758, 0.0
    %v791 = vmax.f32 %v759, 0.0
    %v792 = vmax.f32 %v760, 0.0
    %v793 = vmax.f32 %v761, 0.0
    %v794 = vmax.f32 %v762, 0.0
    %v795 = vmax.f32 %v763, 0.0
    %v796 = vmax.f32 %v764, 0.0
    %v797 = vmax.f32 %v765, 0.0
    %v798 = vmax.f32 %v766, 0.0
    %v799 = vmax.f32 %v767, 0.0
    %v800 = vmax.f32 %v768, 0.0
    %v801 = vmax.f32 %v769, 0.0
    %v802 = vmax.f32 %v770, 0.0
    %v803 = vmax.f32 %v771, 0.0
    %v804 = vmax.f32 %v772, 0.0
    %v805 = vmax.f32 %v773, 0.0
    %v806 = vmax.f32 %v774, 0.0
    %v807 = vmax.f32 %v775, 0.0
    %v808 = vmax.f32 %v776, 0.0
    %v809 = vmax.f32 %v777, 0.0
    %v810 = vmax.f32 %v778, 0.0
    %v811 = vmax.f32 %v779, 0.0
    %v812 = vmax.f32 %v780, 0.0
    %v813 = vmax.f32 %v781, 0.0
    %v814 = vmax.f32 %v782, 0.0
    %v815 = vmax.f32 %v783, 0.0
    %v816 = vmax.f32 %v784, 0.0
    %v817 = vmax.f32 %v785, 0.0
    %v818 = vmax.f32 %v786, 0.0
    %v819 = vmax.f32 %v787, 0.0
    %v820 = vmax.f32 %v788, 0.0
    %v821 = vmax.f32 %v789, 0.0
    %v822 = vld [vmem:[%s5] sm:$0x1]
    %v823 = vpack.c.bf16 %v791, %v790
    %v824 = vpack.c.bf16 %v793, %v792
    %v825 = vpack.c.bf16 %v795, %v794
    %v826 = vpack.c.bf16 %v797, %v796
    %v827 = vpack.c.bf16 %v799, %v798
    %v828 = vpack.c.bf16 %v801, %v800
    %v829 = vpack.c.bf16 %v803, %v802
    %v830 = vpack.c.bf16 %v805, %v804
    %v831 = vpack.c.bf16 %v807, %v806
    %v832 = vpack.c.bf16 %v809, %v808
    %v833 = vpack.c.bf16 %v811, %v810
    %v834 = vpack.c.bf16 %v813, %v812
    %v835 = vpack.c.bf16 %v815, %v814
    %v836 = vpack.c.bf16 %v817, %v816
    %v837 = vpack.c.bf16 %v819, %v818
    %v838 = vpack.c.bf16 %v821, %v820
    %s839 = sld [smem:[#allocation2]]
    %v840 = vstv %s839
    %841 = vmatprep.subr.bf16.mxu0 0
    %842 = vmatpush1.bf16.xpose.msra.mxu0 %v823
    %843 = vmatprep.subr.bf16.mxu0 0
    %844 = vmatpush1.bf16.xpose.msra.mxu0 %v824
    %845 = vmatprep.subr.bf16.mxu0 0
    %846 = vmatpush1.bf16.xpose.msra.mxu0 %v825
    %847 = vmatprep.subr.bf16.mxu0 0
    %848 = vmatpush1.bf16.xpose.msra.mxu0 %v826
    %849 = vmatprep.subr.bf16.mxu0 0
    %850 = vmatpush1.bf16.xpose.msra.mxu0 %v827
    %851 = vmatprep.subr.bf16.mxu0 0
    %852 = vmatpush1.bf16.xpose.msra.mxu0 %v828
    %853 = vmatprep.subr.bf16.mxu0 0
    %854 = vmatpush1.bf16.xpose.msra.mxu0 %v829
    %855 = vmatprep.subr.bf16.mxu0 0
    %856 = vmatpush1.bf16.xpose.msra.mxu0 %v830
    %857 = vmatprep.subr.bf16.mxu0 0
    %858 = vmatpush1.bf16.xpose.msra.mxu0 %v831
    %859 = vmatprep.subr.bf16.mxu0 0
    %860 = vmatpush1.bf16.xpose.msra.mxu0 %v832
    %861 = vmatprep.subr.bf16.mxu0 0
    %862 = vmatpush1.bf16.xpose.msra.mxu0 %v833
    %863 = vmatprep.subr.bf16.mxu0 0
    %864 = vmatpush1.bf16.xpose.msra.mxu0 %v834
    %865 = vmatprep.subr.bf16.mxu0 0
    %866 = vmatpush1.bf16.xpose.msra.mxu0 %v835
    %867 = vmatprep.subr.bf16.mxu0 0
    %868 = vmatpush1.bf16.xpose.msra.mxu0 %v836
    %869 = vmatprep.subr.bf16.mxu0 0
    %870 = vmatpush1.bf16.xpose.msra.mxu0 %v837
    %871 = vmatprep.subr.bf16.mxu0 0
    %872 = vmatpush1.bf16.xpose.msra.mxu0 %v838
    %873 = vmatprep.mubr.bf16.mxu0 0
    %874 = vmatmul.mubr.bf16.gmra.mrb[0].mxu0 %v822
    %v875 = vpop.f32.mrb[0].mxu0
    %v876 = vadd.f32 %v840, %v875
    %v877 = vpop.f32.mrb[0].mxu0
    %v878 = vadd.f32 %v840, %v877
    %v879 = vpop.f32.mrb[0].mxu0
    %v880 = vpop.f32.mrb[0].mxu0
    %881 = vdwg.mxu0
    %v884 = vcombine.low %v876, %v878
    %v886 = vunpack.c.l.s4 1966171168
    %v887 = vunpack.c.0.s8 %v886
    %v888 = vlaneseq
    %v889 = vshrl.u32 %v888, 7
    %v890 = vsub.s32 %v887, %v889
    %v891 = vrot.slane %v884, %v890
    %v893 = vunpack.c.l.s4 1966171168
    %v894 = vunpack.c.0.s8 %v893
    %v895 = vlaneseq
    %v896 = vshrl.u32 %v895, 7
    %v897 = vsub.s32 %v894, %v896
    %v898 = vrot.slane %v891, %v897
    %v900 = vlaneseq
    %vm901 = vcmp.ge.s32.totalorder %v900, 0
    %vm902 = vcmp.lt.s32.totalorder %v900, 256
    %vm903 = vmand %vm901, %vm902
    %904 = vst.msk [vmem:[#allocation3] sm:$0x3] %vm903, %v898
    // Predicated region
    $region30: #{tpu_custom_call.1} parent=1 // pred_check
      _
    $region31: #{tpu_custom_call.1} parent=1 // pred_check_branch
      %906 = sbr.rel (0) target = $region33
    $region32: #{tpu_custom_call.1} parent=1 // pred_region
      %s907 = smul.u32 2, %s11
      %s909 = ssub.s32 32, 32
      %910 = vsyncadd [#allocation4], %s909
      %s911 = smul.addr %s907, 16
      %s912 = scalar_lea.hbm %s7, %s911
      %s914 = sshll.u32 [#allocation3], 4
      %s915 = int_to_ptr.vmem [resolvable:$true] %s914
      %917 = dma.vmem_to_hbm [thread:$0]  %s915, 32, %s912, [#allocation4]
    $region33: #{tpu_custom_call.1} parent=1 // pred_fallthru
      _
    // Predicated region
    $region34: #{tpu_custom_call.1} parent=1 // pred_check
      _
    $region35: #{tpu_custom_call.1} parent=1 // pred_check_branch
      %919 = sbr.rel (0) target = $region37
    $region36: #{tpu_custom_call.1} parent=1 // pred_region
      %920 = dma.done [#allocation4], 32
    $region37: #{tpu_custom_call.1} parent=1 // pred_fallthru
      _
    %921 = vsyncpa [#allocation4], 1

// kernel: tpu_custom_call.1
$region0: #{tpu_custom_call.1}
  #allocation0 [shape = 'u32[]', space=smem, size = 0x4, offset = 0x4, fixed_abs, tag = 'smem constant byte address 0x4 - core index']
  #allocation1 [shape = 'u32[144,128]{1,0:T(1,128)}', space=vmem, size = 0x12000, scoped, tag = 'internal scratch']
  #allocation2 [shape = 'f32[1]{0:T(128)S(6)}', space=smem, size = 0x200, scoped, tag = 'scoped memory for tpu_custom_call.1']
  %s0 = inlined_call_operand.vmem [shape: bf16[200,23], index: 0, kind: input, shape index: {}]
  %s1 = inlined_call_operand.vmem [shape: bf16[23,256], index: 1, kind: input, shape index: {}]
  %s2 = inlined_call_operand.vmem [shape: f32[1,128], index: 2, kind: input, shape index: {}]
  %s3 = inlined_call_operand.vmem [shape: bf16[128,128], index: 3, kind: input, shape index: {}]
  %s4 = inlined_call_operand.vmem [shape: f32[1,128], index: 4, kind: input, shape index: {}]
  %s5 = inlined_call_operand.vmem [shape: bf16[1,128], index: 5, kind: input, shape index: {}]
  %s6 = inlined_call_operand.<no memory space> [shape: f32[1], index: 6, kind: input, shape index: {}]
  %s7 = inlined_call_operand.hbm [shape: f32[1,256], index: 7, kind: output, shape index: {}]
  %s8 = sld [smem:[#allocation0]]
  $region38: #{tpu_custom_call.1} parent=0
    _
  %s10 = ssub.s32 1, %s8
  %s11 = scalar_select 0, %s10, %s8
  %12 = sst [smem:[#allocation2]] %s6
  $region1: #{tpu_custom_call.1} parent=0
    #allocation3 [shape = 'u8[1024]{0}', space=vmem, size = 0x400, scoped, tag = 'output window, operand 0, single buffered']
    #allocation4 [shape = 's32[1]{0}', space=sflag, size = 0x4, scoped, tag = 'scoped memory for tpu_custom_call.1']
    %13 = vsyncpa [#allocation4], 0
    // Predicated region
    $region2: #{tpu_custom_call.1} parent=1 // pred_check
      _
    $region3: #{tpu_custom_call.1} parent=1 // pred_check_branch
      %15 = sbr.rel (0) target = $region5
    $region4: #{tpu_custom_call.1} parent=1 // pred_region
      _
    $region5: #{tpu_custom_call.1} parent=1 // pred_fallthru
      _
    // Predicated region
    $region6: #{tpu_custom_call.1} parent=1 // pred_check
      _
    $region7: #{tpu_custom_call.1} parent=1 // pred_check_branch
      %17 = sbr.rel (0) target = $region9
    $region8: #{tpu_custom_call.1} parent=1 // pred_region
      _
    $region9: #{tpu_custom_call.1} parent=1 // pred_fallthru
      _
    // Predicated region
    $region10: #{tpu_custom_call.1} parent=1 // pred_check
      _
    $region11: #{tpu_custom_call.1} parent=1 // pred_check_branch
      %19 = sbr.rel (0) target = $region13
    $region12: #{tpu_custom_call.1} parent=1 // pred_region
      _
    $region13: #{tpu_custom_call.1} parent=1 // pred_fallthru
      _
    // Predicated region
    $region14: #{tpu_custom_call.1} parent=1 // pred_check
      _
    $region15: #{tpu_custom_call.1} parent=1 // pred_check_branch
      %21 = sbr.rel (0) target = $region17
    $region16: #{tpu_custom_call.1} parent=1 // pred_region
      _
    $region17: #{tpu_custom_call.1} parent=1 // pred_fallthru
      _
    // Predicated region
    $region18: #{tpu_custom_call.1} parent=1 // pred_check
      _
    $region19: #{tpu_custom_call.1} parent=1 // pred_check_branch
      %23 = sbr.rel (0) target = $region21
    $region20: #{tpu_custom_call.1} parent=1 // pred_region
      _
    $region21: #{tpu_custom_call.1} parent=1 // pred_fallthru
      _
    // Predicated region
    $region22: #{tpu_custom_call.1} parent=1 // pred_check
      _
    $region23: #{tpu_custom_call.1} parent=1 // pred_check_branch
      %25 = sbr.rel (0) target = $region25
    $region24: #{tpu_custom_call.1} parent=1 // pred_region
      _
    $region25: #{tpu_custom_call.1} parent=1 // pred_fallthru
      _
    // Predicated region
    $region26: #{tpu_custom_call.1} parent=1 // pred_check
      _
    $region27: #{tpu_custom_call.1} parent=1 // pred_check_branch
      %27 = sbr.rel (0) target = $region29
    $region28: #{tpu_custom_call.1} parent=1 // pred_region
      _
    $region29: #{tpu_custom_call.1} parent=1 // pred_fallthru
      _
    %v29 = vld [vmem:[%s0] sm:$0xf]
    %v30 = vld [vmem:[%s0 + $0x4] sm:$0xf]
    %v31 = vld [vmem:[%s0 + $0x8] sm:$0xf]
    %v32 = vld [vmem:[%s0 + $0xc] sm:$0xf]
    %v33 = vld [vmem:[%s0 + $0x10] sm:$0xf]
    %v34 = vld [vmem:[%s0 + $0x14] sm:$0xf]
    %v35 = vld [vmem:[%s0 + $0x18] sm:$0xf]
    %v36 = vld [vmem:[%s0 + $0x1c] sm:$0xf]
    %v37 = vld [vmem:[%s0 + $0x20] sm:$0xf]
    %v38 = vld [vmem:[%s0 + $0x24] sm:$0xf]
    %v39 = vld [vmem:[%s0 + $0x28] sm:$0xf]
    %v40 = vld [vmem:[%s0 + $0x2c] sm:$0xf]
    %v41 = vld [vmem:[%s0 + $0x30] sm:$0xf]
    %v42 = vld [vmem:[%s0 + $0x34] sm:$0xf]
    %v43 = vld [vmem:[%s0 + $0x38] sm:$0xf]
    %v44 = vld [vmem:[%s0 + $0x3c] sm:$0xf]
    %v45 = vld [vmem:[%s0 + $0x40] sm:$0xf]
    %v46 = vld [vmem:[%s0 + $0x44] sm:$0xf]
    %v47 = vld [vmem:[%s0 + $0x48] sm:$0xf]
    %v48 = vld [vmem:[%s0 + $0x4c] sm:$0xf]
    %v49 = vld [vmem:[%s0 + $0x50] sm:$0xf]
    %v50 = vld [vmem:[%s0 + $0x54] sm:$0xf]
    %v51 = vld [vmem:[%s0 + $0x58] sm:$0xf]
    %v52 = vld [vmem:[%s0 + $0x5c] sm:$0xf]
    %v53 = vld [vmem:[%s0 + $0x60] sm:$0xf]
    %v54 = vld [vmem:[%s0 + $0x64] sm:$0xf]
    %v55 = vld [vmem:[%s0 + $0x68] sm:$0xf]
    %v56 = vld [vmem:[%s0 + $0x6c] sm:$0xf]
    %v57 = vld [vmem:[%s0 + $0x70] sm:$0xf]
    %v58 = vld [vmem:[%s0 + $0x74] sm:$0xf]
    %v59 = vld [vmem:[%s0 + $0x78] sm:$0xf]
    %v60 = vld [vmem:[%s0 + $0x7c] sm:$0xf]
    %v61 = vld [vmem:[%s1] sm:$0xff]
    %v62 = vld [vmem:[%s1 + $0x8] sm:$0xff]
    %v63 = vld [vmem:[%s1 + $0x10] sm:$0xff]
    %v96 = vunpack.c.l.b16 %v29
    %v97 = vunpack.c.l.b16 %v30
    %v98 = vunpack.c.l.b16 %v31
    %v99 = vunpack.c.l.b16 %v32
    %v100 = vunpack.c.l.b16 %v33
    %v101 = vunpack.c.l.b16 %v34
    %v102 = vunpack.c.l.b16 %v35
    %v103 = vunpack.c.l.b16 %v36
    %v104 = vunpack.c.l.b16 %v37
    %v105 = vunpack.c.l.b16 %v38
    %v106 = vunpack.c.l.b16 %v39
    %v107 = vunpack.c.l.b16 %v40
    %v108 = vunpack.c.l.b16 %v41
    %v109 = vunpack.c.l.b16 %v42
    %v110 = vunpack.c.l.b16 %v43
    %v111 = vunpack.c.l.b16 %v44
    %v112 = vunpack.c.l.b16 %v45
    %v113 = vunpack.c.l.b16 %v46
    %v114 = vunpack.c.l.b16 %v47
    %v115 = vunpack.c.l.b16 %v48
    %v116 = vunpack.c.l.b16 %v49
    %v117 = vunpack.c.l.b16 %v50
    %v118 = vunpack.c.l.b16 %v51
    %v119 = vunpack.c.l.b16 %v52
    %v120 = vunpack.c.l.b16 %v53
    %v121 = vunpack.c.l.b16 %v54
    %v122 = vunpack.c.l.b16 %v55
    %v123 = vunpack.c.l.b16 %v56
    %v124 = vunpack.c.l.b16 %v57
    %v125 = vunpack.c.l.b16 %v58
    %v126 = vunpack.c.l.b16 %v59
    %v127 = vunpack.c.l.b16 %v60
    %v128 = vpack.c.b16 %v97, %v96
    %v129 = vpack.c.b16 %v99, %v98
    %v130 = vpack.c.b16 %v101, %v100
    %v131 = vpack.c.b16 %v103, %v102
    %v132 = vpack.c.b16 %v105, %v104
    %v133 = vpack.c.b16 %v107, %v106
    %v134 = vpack.c.b16 %v109, %v108
    %v135 = vpack.c.b16 %v111, %v110
    %v136 = vpack.c.b16 %v113, %v112
    %v137 = vpack.c.b16 %v115, %v114
    %v138 = vpack.c.b16 %v117, %v116
    %v139 = vpack.c.b16 %v119, %v118
    %v140 = vpack.c.b16 %v121, %v120
    %v141 = vpack.c.b16 %v123, %v122
    %v142 = vpack.c.b16 %v125, %v124
    %v143 = vpack.c.b16 %v127, %v126
    %v147 = vunpack.c.l.b16 %v61
    %v148 = vunpack.c.h.b16 %v61
    %v149 = vunpack.c.l.b16 %v62
    %v150 = vunpack.c.h.b16 %v62
    %v151 = vunpack.c.l.b16 %v63
    %v152 = vunpack.c.h.b16 %v63
    %v153 = vpack.c.b16 %v149, %v147
    %v154 = vpack.c.b16 %v150, %v148
    %v155 = vpack.c.b16 %v151, %v151
    %v156 = vpack.c.b16 %v152, %v152
    %vm159 = vcmask 187392
    %v161 = vsel %vm159, %v128, 0
    %v164 = vsel %vm159, %v129, 0
    %v167 = vsel %vm159, %v130, 0
    %v170 = vsel %vm159, %v131, 0
    %v173 = vsel %vm159, %v132, 0
    %v176 = vsel %vm159, %v133, 0
    %v179 = vsel %vm159, %v134, 0
    %v182 = vsel %vm159, %v135, 0
    %v185 = vsel %vm159, %v136, 0
    %v188 = vsel %vm159, %v137, 0
    %v191 = vsel %vm159, %v138, 0
    %v194 = vsel %vm159, %v139, 0
    %v197 = vsel %vm159, %v140, 0
    %v200 = vsel %vm159, %v141, 0
    %v203 = vsel %vm159, %v142, 0
    %v206 = vsel %vm159, %v143, 0
    %vm208 = vcmask 1042432
    %vm209 = vcmask 1043456
    %v210 = vsel %vm208, 4294967295, 65535
    %v211 = vsel %vm209, %v210, 0
    %v213 = vand.u32 %v155, %v211
    %v216 = vand.u32 %v156, %v211
    %218 = vmatprep.subr.bf16.mxu0 %v154
    %219 = vmatpush1.bf16.msra.mxu0 %v153
    %220 = vmatprep.subr.bf16.mxu0 %v216
    %221 = vmatpush1.bf16.msra.mxu0 %v213
    %222 = vmatprep.subr.bf16.mxu0 0
    %223 = vmatpush1.bf16.msra.mxu0 0
    %224 = vmatprep.subr.bf16.mxu0 0
    %225 = vmatpush1.bf16.msra.mxu0 0
    %226 = vmatprep.subr.bf16.mxu0 0
    %227 = vmatpush1.bf16.msra.mxu0 0
    %228 = vmatprep.subr.bf16.mxu0 0
    %229 = vmatpush1.bf16.msra.mxu0 0
    %230 = vmatprep.subr.bf16.mxu0 0
    %231 = vmatpush1.bf16.msra.mxu0 0
    %232 = vmatprep.subr.bf16.mxu0 0
    %233 = vmatpush1.bf16.msra.mxu0 0
    %234 = vmatprep.subr.bf16.mxu0 0
    %235 = vmatpush1.bf16.msra.mxu0 0
    %236 = vmatprep.subr.bf16.mxu0 0
    %237 = vmatpush1.bf16.msra.mxu0 0
    %238 = vmatprep.subr.bf16.mxu0 0
    %239 = vmatpush1.bf16.msra.mxu0 0
    %240 = vmatprep.subr.bf16.mxu0 0
    %241 = vmatpush1.bf16.msra.mxu0 0
    %242 = vmatprep.subr.bf16.mxu0 0
    %243 = vmatpush1.bf16.msra.mxu0 0
    %244 = vmatprep.subr.bf16.mxu0 0
    %245 = vmatpush1.bf16.msra.mxu0 0
    %246 = vmatprep.subr.bf16.mxu0 0
    %247 = vmatpush1.bf16.msra.mxu0 0
    %248 = vmatprep.subr.bf16.mxu0 0
    %249 = vmatpush1.bf16.msra.mxu0 0
    %250 = vmatprep.mubr.bf16.mxu0 0
    %251 = vmatmul.mubr.bf16.gmra.mrb[0].mxu0 %v161
    %v252 = vpop.f32.mrb[0].mxu0
    %v253 = vadd.f32 0.0, %v252
    %v254 = vpop.f32.mrb[0].mxu0
    %v255 = vadd.f32 0.0, %v254
    %v256 = vpop.f32.mrb[0].mxu0
    %v257 = vadd.f32 0.0, %v256
    %v258 = vpop.f32.mrb[0].mxu0
    %v259 = vadd.f32 0.0, %v258
    %260 = vmatprep.mubr.bf16.mxu0 0
    %261 = vmatmul.mubr.bf16.gmra.mrb[0].mxu0 %v164
    %v262 = vpop.f32.mrb[0].mxu0
    %v263 = vadd.f32 0.0, %v262
    %v264 = vpop.f32.mrb[0].mxu0
    %v265 = vadd.f32 0.0, %v264
    %v266 = vpop.f32.mrb[0].mxu0
    %v267 = vadd.f32 0.0, %v266
    %v268 = vpop.f32.mrb[0].mxu0
    %v269 = vadd.f32 0.0, %v268
    %270 = vmatprep.mubr.bf16.mxu0 0
    %271 = vmatmul.mubr.bf16.gmra.mrb[0].mxu0 %v167
    %v272 = vpop.f32.mrb[0].mxu0
    %v273 = vadd.f32 0.0, %v272
    %v274 = vpop.f32.mrb[0].mxu0
    %v275 = vadd.f32 0.0, %v274
    %v276 = vpop.f32.mrb[0].mxu0
    %v277 = vadd.f32 0.0, %v276
    %v278 = vpop.f32.mrb[0].mxu0
    %v279 = vadd.f32 0.0, %v278
    %280 = vmatprep.mubr.bf16.mxu0 0
    %281 = vmatmul.mubr.bf16.gmra.mrb[0].mxu0 %v170
    %v282 = vpop.f32.mrb[0].mxu0
    %v283 = vadd.f32 0.0, %v282
    %v284 = vpop.f32.mrb[0].mxu0
    %v285 = vadd.f32 0.0, %v284
    %v286 = vpop.f32.mrb[0].mxu0
    %v287 = vadd.f32 0.0, %v286
    %v288 = vpop.f32.mrb[0].mxu0
    %v289 = vadd.f32 0.0, %v288
    %290 = vmatprep.mubr.bf16.mxu0 0
    %291 = vmatmul.mubr.bf16.gmra.mrb[0].mxu0 %v173
    %v292 = vpop.f32.mrb[0].mxu0
    %v293 = vadd.f32 0.0, %v292
    %v294 = vpop.f32.mrb[0].mxu0
    %v295 = vadd.f32 0.0, %v294
    %v296 = vpop.f32.mrb[0].mxu0
    %v297 = vadd.f32 0.0, %v296
    %v298 = vpop.f32.mrb[0].mxu0
    %v299 = vadd.f32 0.0, %v298
    %300 = vmatprep.mubr.bf16.mxu0 0
    %301 = vmatmul.mubr.bf16.gmra.mrb[0].mxu0 %v176
    %v302 = vpop.f32.mrb[0].mxu0
    %v303 = vadd.f32 0.0, %v302
    %v304 = vpop.f32.mrb[0].mxu0
    %v305 = vadd.f32 0.0, %v304
    %v306 = vpop.f32.mrb[0].mxu0
    %v307 = vadd.f32 0.0, %v306
    %v308 = vpop.f32.mrb[0].mxu0
    %v309 = vadd.f32 0.0, %v308
    %310 = vmatprep.mubr.bf16.mxu0 0
    %311 = vmatmul.mubr.bf16.gmra.mrb[0].mxu0 %v179
    %v312 = vpop.f32.mrb[0].mxu0
    %v313 = vadd.f32 0.0, %v312
    %v314 = vpop.f32.mrb[0].mxu0
    %v315 = vadd.f32 0.0, %v314
    %v316 = vpop.f32.mrb[0].mxu0
    %v317 = vadd.f32 0.0, %v316
    %v318 = vpop.f32.mrb[0].mxu0
    %v319 = vadd.f32 0.0, %v318
    %320 = vmatprep.mubr.bf16.mxu0 0
    %321 = vmatmul.mubr.bf16.gmra.mrb[0].mxu0 %v182
    %v322 = vpop.f32.mrb[0].mxu0
    %v323 = vadd.f32 0.0, %v322
    %v324 = vpop.f32.mrb[0].mxu0
    %v325 = vadd.f32 0.0, %v324
    %v326 = vpop.f32.mrb[0].mxu0
    %v327 = vadd.f32 0.0, %v326
    %v328 = vpop.f32.mrb[0].mxu0
    %v329 = vadd.f32 0.0, %v328
    %330 = vmatprep.mubr.bf16.mxu0 0
    %331 = vmatmul.mubr.bf16.gmra.mrb[0].mxu0 %v185
    %v332 = vpop.f32.mrb[0].mxu0
    %v333 = vadd.f32 0.0, %v332
    %v334 = vpop.f32.mrb[0].mxu0
    %v335 = vadd.f32 0.0, %v334
    %v336 = vpop.f32.mrb[0].mxu0
    %v337 = vadd.f32 0.0, %v336
    %v338 = vpop.f32.mrb[0].mxu0
    %v339 = vadd.f32 0.0, %v338
    %340 = vmatprep.mubr.bf16.mxu0 0
    %341 = vmatmul.mubr.bf16.gmra.mrb[0].mxu0 %v188
    %v342 = vpop.f32.mrb[0].mxu0
    %v343 = vadd.f32 0.0, %v342
    %v344 = vpop.f32.mrb[0].mxu0
    %v345 = vadd.f32 0.0, %v344
    %v346 = vpop.f32.mrb[0].mxu0
    %v347 = vadd.f32 0.0, %v346
    %v348 = vpop.f32.mrb[0].mxu0
    %v349 = vadd.f32 0.0, %v348
    %350 = vmatprep.mubr.bf16.mxu0 0
    %351 = vmatmul.mubr.bf16.gmra.mrb[0].mxu0 %v191
    %v352 = vpop.f32.mrb[0].mxu0
    %v353 = vadd.f32 0.0, %v352
    %v354 = vpop.f32.mrb[0].mxu0
    %v355 = vadd.f32 0.0, %v354
    %v356 = vpop.f32.mrb[0].mxu0
    %v357 = vadd.f32 0.0, %v356
    %v358 = vpop.f32.mrb[0].mxu0
    %v359 = vadd.f32 0.0, %v358
    %360 = vmatprep.mubr.bf16.mxu0 0
    %361 = vmatmul.mubr.bf16.gmra.mrb[0].mxu0 %v194
    %v362 = vpop.f32.mrb[0].mxu0
    %v363 = vadd.f32 0.0, %v362
    %v364 = vpop.f32.mrb[0].mxu0
    %v365 = vadd.f32 0.0, %v364
    %v366 = vpop.f32.mrb[0].mxu0
    %v367 = vadd.f32 0.0, %v366
    %v368 = vpop.f32.mrb[0].mxu0
    %v369 = vadd.f32 0.0, %v368
    %370 = vmatprep.mubr.bf16.mxu0 0
    %371 = vmatmul.mubr.bf16.gmra.mrb[0].mxu0 %v197
    %v372 = vpop.f32.mrb[0].mxu0
    %v373 = vadd.f32 0.0, %v372
    %v374 = vpop.f32.mrb[0].mxu0
    %v375 = vadd.f32 0.0, %v374
    %v376 = vpop.f32.mrb[0].mxu0
    %v377 = vadd.f32 0.0, %v376
    %v378 = vpop.f32.mrb[0].mxu0
    %v379 = vadd.f32 0.0, %v378
    %380 = vmatprep.mubr.bf16.mxu0 0
    %381 = vmatmul.mubr.bf16.gmra.mrb[0].mxu0 %v200
    %v382 = vpop.f32.mrb[0].mxu0
    %v383 = vadd.f32 0.0, %v382
    %v384 = vpop.f32.mrb[0].mxu0
    %v385 = vadd.f32 0.0, %v384
    %v386 = vpop.f32.mrb[0].mxu0
    %v387 = vadd.f32 0.0, %v386
    %v388 = vpop.f32.mrb[0].mxu0
    %v389 = vadd.f32 0.0, %v388
    %390 = vmatprep.mubr.bf16.mxu0 0
    %391 = vmatmul.mubr.bf16.gmra.mrb[0].mxu0 %v203
    %v392 = vpop.f32.mrb[0].mxu0
    %v393 = vadd.f32 0.0, %v392
    %v394 = vpop.f32.mrb[0].mxu0
    %v395 = vadd.f32 0.0, %v394
    %v396 = vpop.f32.mrb[0].mxu0
    %v397 = vadd.f32 0.0, %v396
    %v398 = vpop.f32.mrb[0].mxu0
    %v399 = vadd.f32 0.0, %v398
    %400 = vmatprep.mubr.bf16.mxu0 0
    %401 = vmatmul.mubr.bf16.gmra.mrb[0].mxu0 %v206
    %v402 = vpop.f32.mrb[0].mxu0
    %v403 = vadd.f32 0.0, %v402
    %v404 = vpop.f32.mrb[0].mxu0
    %v405 = vadd.f32 0.0, %v404
    %v406 = vpop.f32.mrb[0].mxu0
    %v407 = vadd.f32 0.0, %v406
    %v408 = vpop.f32.mrb[0].mxu0
    %v409 = vadd.f32 0.0, %v408
    %410 = vdwg.mxu0
    %v411 = vld [vmem:[%s2] sm:$0x1]
    %v413 = vlaneseq
    %v414 = vshrl.u32 %v413, 7
    %v415 = vsub.s32 0, %v414
    %v416 = vrot.slane %v411, %v415
    %v418 = vadd.f32 %v253, %v416
    %v419 = vadd.f32 %v257, %v416
    %v420 = vadd.f32 %v263, %v416
    %v421 = vadd.f32 %v267, %v416
    %v422 = vadd.f32 %v273, %v416
    %v423 = vadd.f32 %v277, %v416
    %v424 = vadd.f32 %v283, %v416
    %v425 = vadd.f32 %v287, %v416
    %v426 = vadd.f32 %v293, %v416
    %v427 = vadd.f32 %v297, %v416
    %v428 = vadd.f32 %v303, %v416
    %v429 = vadd.f32 %v307, %v416
    %v430 = vadd.f32 %v313, %v416
    %v431 = vadd.f32 %v317, %v416
    %v432 = vadd.f32 %v323, %v416
    %v433 = vadd.f32 %v327, %v416
    %v434 = vadd.f32 %v333, %v416
    %v435 = vadd.f32 %v337, %v416
    %v436 = vadd.f32 %v343, %v416
    %v437 = vadd.f32 %v347, %v416
    %v438 = vadd.f32 %v353, %v416
    %v439 = vadd.f32 %v357, %v416
    %v440 = vadd.f32 %v363, %v416
    %v441 = vadd.f32 %v367, %v416
    %v442 = vadd.f32 %v373, %v416
    %v443 = vadd.f32 %v377, %v416
    %v444 = vadd.f32 %v383, %v416
    %v445 = vadd.f32 %v387, %v416
    %v446 = vadd.f32 %v393, %v416
    %v447 = vadd.f32 %v397, %v416
    %v448 = vadd.f32 %v403, %v416
    %v449 = vadd.f32 %v407, %v416
    %v450 = vmax.f32 %v418, 0.0
    %v451 = vmax.f32 %v419, 0.0
    %v452 = vmax.f32 %v420, 0.0
    %v453 = vmax.f32 %v421, 0.0
    %v454 = vmax.f32 %v422, 0.0
    %v455 = vmax.f32 %v423, 0.0
    %v456 = vmax.f32 %v424, 0.0
    %v457 = vmax.f32 %v425, 0.0
    %v458 = vmax.f32 %v426, 0.0
    %v459 = vmax.f32 %v427, 0.0
    %v460 = vmax.f32 %v428, 0.0
    %v461 = vmax.f32 %v429, 0.0
    %v462 = vmax.f32 %v430, 0.0
    %v463 = vmax.f32 %v431, 0.0
    %v464 = vmax.f32 %v432, 0.0
    %v465 = vmax.f32 %v433, 0.0
    %v466 = vmax.f32 %v434, 0.0
    %v467 = vmax.f32 %v435, 0.0
    %v468 = vmax.f32 %v436, 0.0
    %v469 = vmax.f32 %v437, 0.0
    %v470 = vmax.f32 %v438, 0.0
    %v471 = vmax.f32 %v439, 0.0
    %v472 = vmax.f32 %v440, 0.0
    %v473 = vmax.f32 %v441, 0.0
    %v474 = vmax.f32 %v442, 0.0
    %v475 = vmax.f32 %v443, 0.0
    %v476 = vmax.f32 %v444, 0.0
    %v477 = vmax.f32 %v445, 0.0
    %v478 = vmax.f32 %v446, 0.0
    %v479 = vmax.f32 %v447, 0.0
    %v480 = vmax.f32 %v448, 0.0
    %v481 = vmax.f32 %v449, 0.0
    %v482 = vpack.c.bf16 %v451, %v450
    %v483 = vpack.c.bf16 %v453, %v452
    %v484 = vpack.c.bf16 %v455, %v454
    %v485 = vpack.c.bf16 %v457, %v456
    %v486 = vpack.c.bf16 %v459, %v458
    %v487 = vpack.c.bf16 %v461, %v460
    %v488 = vpack.c.bf16 %v463, %v462
    %v489 = vpack.c.bf16 %v465, %v464
    %v490 = vpack.c.bf16 %v467, %v466
    %v491 = vpack.c.bf16 %v469, %v468
    %v492 = vpack.c.bf16 %v471, %v470
    %v493 = vpack.c.bf16 %v473, %v472
    %v494 = vpack.c.bf16 %v475, %v474
    %v495 = vpack.c.bf16 %v477, %v476
    %v496 = vpack.c.bf16 %v479, %v478
    %v497 = vpack.c.bf16 %v481, %v480
    %v498 = vld [vmem:[%s3] sm:$0xf]
    %v499 = vld [vmem:[%s3 + $0x4] sm:$0xf]
    %v500 = vld [vmem:[%s3 + $0x8] sm:$0xf]
    %v501 = vld [vmem:[%s3 + $0xc] sm:$0xf]
    %v502 = vld [vmem:[%s3 + $0x10] sm:$0xf]
    %v503 = vld [vmem:[%s3 + $0x14] sm:$0xf]
    %v504 = vld [vmem:[%s3 + $0x18] sm:$0xf]
    %v505 = vld [vmem:[%s3 + $0x1c] sm:$0xf]
    %v506 = vld [vmem:[%s3 + $0x20] sm:$0xf]
    %v507 = vld [vmem:[%s3 + $0x24] sm:$0xf]
    %v508 = vld [vmem:[%s3 + $0x28] sm:$0xf]
    %v509 = vld [vmem:[%s3 + $0x2c] sm:$0xf]
    %v510 = vld [vmem:[%s3 + $0x30] sm:$0xf]
    %v511 = vld [vmem:[%s3 + $0x34] sm:$0xf]
    %v512 = vld [vmem:[%s3 + $0x38] sm:$0xf]
    %v513 = vld [vmem:[%s3 + $0x3c] sm:$0xf]
    %v530 = vunpack.c.l.b16 %v498
    %v531 = vunpack.c.l.b16 %v499
    %v532 = vunpack.c.l.b16 %v500
    %v533 = vunpack.c.l.b16 %v501
    %v534 = vunpack.c.l.b16 %v502
    %v535 = vunpack.c.l.b16 %v503
    %v536 = vunpack.c.l.b16 %v504
    %v537 = vunpack.c.l.b16 %v505
    %v538 = vunpack.c.l.b16 %v506
    %v539 = vunpack.c.l.b16 %v507
    %v540 = vunpack.c.l.b16 %v508
    %v541 = vunpack.c.l.b16 %v509
    %v542 = vunpack.c.l.b16 %v510
    %v543 = vunpack.c.l.b16 %v511
    %v544 = vunpack.c.l.b16 %v512
    %v545 = vunpack.c.l.b16 %v513
    %v546 = vpack.c.b16 %v531, %v530
    %v547 = vpack.c.b16 %v533, %v532
    %v548 = vpack.c.b16 %v535, %v534
    %v549 = vpack.c.b16 %v537, %v536
    %v550 = vpack.c.b16 %v539, %v538
    %v551 = vpack.c.b16 %v541, %v540
    %v552 = vpack.c.b16 %v543, %v542
    %v553 = vpack.c.b16 %v545, %v544
    %562 = vmatprep.subr.bf16.mxu0 0
    %563 = vmatpush1.bf16.msra.mxu0 %v546
    %564 = vmatprep.subr.bf16.mxu0 0
    %565 = vmatpush1.bf16.msra.mxu0 %v547
    %566 = vmatprep.subr.bf16.mxu0 0
    %567 = vmatpush1.bf16.msra.mxu0 %v548
    %568 = vmatprep.subr.bf16.mxu0 0
    %569 = vmatpush1.bf16.msra.mxu0 %v549
    %570 = vmatprep.subr.bf16.mxu0 0
    %571 = vmatpush1.bf16.msra.mxu0 %v550
    %572 = vmatprep.subr.bf16.mxu0 0
    %573 = vmatpush1.bf16.msra.mxu0 %v551
    %574 = vmatprep.subr.bf16.mxu0 0
    %575 = vmatpush1.bf16.msra.mxu0 %v552
    %576 = vmatprep.subr.bf16.mxu0 0
    %577 = vmatpush1.bf16.msra.mxu0 %v553
    %578 = vmatprep.subr.bf16.mxu0 0
    %579 = vmatpush1.bf16.msra.mxu0 0
    %580 = vmatprep.subr.bf16.mxu0 0
    %581 = vmatpush1.bf16.msra.mxu0 0
    %582 = vmatprep.subr.bf16.mxu0 0
    %583 = vmatpush1.bf16.msra.mxu0 0
    %584 = vmatprep.subr.bf16.mxu0 0
    %585 = vmatpush1.bf16.msra.mxu0 0
    %586 = vmatprep.subr.bf16.mxu0 0
    %587 = vmatpush1.bf16.msra.mxu0 0
    %588 = vmatprep.subr.bf16.mxu0 0
    %589 = vmatpush1.bf16.msra.mxu0 0
    %590 = vmatprep.subr.bf16.mxu0 0
    %591 = vmatpush1.bf16.msra.mxu0 0
    %592 = vmatprep.subr.bf16.mxu0 0
    %593 = vmatpush1.bf16.msra.mxu0 0
    %594 = vmatprep.mubr.bf16.mxu0 0
    %595 = vmatmul.mubr.bf16.gmra.mrb[0].mxu0 %v482
    %v596 = vpop.f32.mrb[0].mxu0
    %v597 = vadd.f32 %v255, %v596
    %v598 = vpop.f32.mrb[0].mxu0
    %v599 = vpop.f32.mrb[0].mxu0
    %v600 = vadd.f32 %v259, %v599
    %v601 = vpop.f32.mrb[0].mxu0
    %602 = vmatprep.mubr.bf16.mxu0 0
    %603 = vmatmul.mubr.bf16.gmra.mrb[0].mxu0 %v483
    %v604 = vpop.f32.mrb[0].mxu0
    %v605 = vadd.f32 %v265, %v604
    %v606 = vpop.f32.mrb[0].mxu0
    %v607 = vpop.f32.mrb[0].mxu0
    %v608 = vadd.f32 %v269, %v607
    %v609 = vpop.f32.mrb[0].mxu0
    %610 = vmatprep.mubr.bf16.mxu0 0
    %611 = vmatmul.mubr.bf16.gmra.mrb[0].mxu0 %v484
    %v612 = vpop.f32.mrb[0].mxu0
    %v613 = vadd.f32 %v275, %v612
    %v614 = vpop.f32.mrb[0].mxu0
    %v615 = vpop.f32.mrb[0].mxu0
    %v616 = vadd.f32 %v279, %v615
    %v617 = vpop.f32.mrb[0].mxu0
    %618 = vmatprep.mubr.bf16.mxu0 0
    %619 = vmatmul.mubr.bf16.gmra.mrb[0].mxu0 %v485
    %v620 = vpop.f32.mrb[0].mxu0
    %v621 = vadd.f32 %v285, %v620
    %v622 = vpop.f32.mrb[0].mxu0
    %v623 = vpop.f32.mrb[0].mxu0
    %v624 = vadd.f32 %v289, %v623
    %v625 = vpop.f32.mrb[0].mxu0
    %626 = vmatprep.mubr.bf16.mxu0 0
    %627 = vmatmul.mubr.bf16.gmra.mrb[0].mxu0 %v486
    %v628 = vpop.f32.mrb[0].mxu0
    %v629 = vadd.f32 %v295, %v628
    %v630 = vpop.f32.mrb[0].mxu0
    %v631 = vpop.f32.mrb[0].mxu0
    %v632 = vadd.f32 %v299, %v631
    %v633 = vpop.f32.mrb[0].mxu0
    %634 = vmatprep.mubr.bf16.mxu0 0
    %635 = vmatmul.mubr.bf16.gmra.mrb[0].mxu0 %v487
    %v636 = vpop.f32.mrb[0].mxu0
    %v637 = vadd.f32 %v305, %v636
    %v638 = vpop.f32.mrb[0].mxu0
    %v639 = vpop.f32.mrb[0].mxu0
    %v640 = vadd.f32 %v309, %v639
    %v641 = vpop.f32.mrb[0].mxu0
    %642 = vmatprep.mubr.bf16.mxu0 0
    %643 = vmatmul.mubr.bf16.gmra.mrb[0].mxu0 %v488
    %v644 = vpop.f32.mrb[0].mxu0
    %v645 = vadd.f32 %v315, %v644
    %v646 = vpop.f32.mrb[0].mxu0
    %v647 = vpop.f32.mrb[0].mxu0
    %v648 = vadd.f32 %v319, %v647
    %v649 = vpop.f32.mrb[0].mxu0
    %650 = vmatprep.mubr.bf16.mxu0 0
    %651 = vmatmul.mubr.bf16.gmra.mrb[0].mxu0 %v489
    %v652 = vpop.f32.mrb[0].mxu0
    %v653 = vadd.f32 %v325, %v652
    %v654 = vpop.f32.mrb[0].mxu0
    %v655 = vpop.f32.mrb[0].mxu0
    %v656 = vadd.f32 %v329, %v655
    %v657 = vpop.f32.mrb[0].mxu0
    %658 = vmatprep.mubr.bf16.mxu0 0
    %659 = vmatmul.mubr.bf16.gmra.mrb[0].mxu0 %v490
    %v660 = vpop.f32.mrb[0].mxu0
    %v661 = vadd.f32 %v335, %v660
    %v662 = vpop.f32.mrb[0].mxu0
    %v663 = vpop.f32.mrb[0].mxu0
    %v664 = vadd.f32 %v339, %v663
    %v665 = vpop.f32.mrb[0].mxu0
    %666 = vmatprep.mubr.bf16.mxu0 0
    %667 = vmatmul.mubr.bf16.gmra.mrb[0].mxu0 %v491
    %v668 = vpop.f32.mrb[0].mxu0
    %v669 = vadd.f32 %v345, %v668
    %v670 = vpop.f32.mrb[0].mxu0
    %v671 = vpop.f32.mrb[0].mxu0
    %v672 = vadd.f32 %v349, %v671
    %v673 = vpop.f32.mrb[0].mxu0
    %674 = vmatprep.mubr.bf16.mxu0 0
    %675 = vmatmul.mubr.bf16.gmra.mrb[0].mxu0 %v492
    %v676 = vpop.f32.mrb[0].mxu0
    %v677 = vadd.f32 %v355, %v676
    %v678 = vpop.f32.mrb[0].mxu0
    %v679 = vpop.f32.mrb[0].mxu0
    %v680 = vadd.f32 %v359, %v679
    %v681 = vpop.f32.mrb[0].mxu0
    %682 = vmatprep.mubr.bf16.mxu0 0
    %683 = vmatmul.mubr.bf16.gmra.mrb[0].mxu0 %v493
    %v684 = vpop.f32.mrb[0].mxu0
    %v685 = vadd.f32 %v365, %v684
    %v686 = vpop.f32.mrb[0].mxu0
    %v687 = vpop.f32.mrb[0].mxu0
    %v688 = vadd.f32 %v369, %v687
    %v689 = vpop.f32.mrb[0].mxu0
    %690 = vmatprep.mubr.bf16.mxu0 0
    %691 = vmatmul.mubr.bf16.gmra.mrb[0].mxu0 %v494
    %v692 = vpop.f32.mrb[0].mxu0
    %v693 = vadd.f32 %v375, %v692
    %v694 = vpop.f32.mrb[0].mxu0
    %v695 = vpop.f32.mrb[0].mxu0
    %v696 = vadd.f32 %v379, %v695
    %v697 = vpop.f32.mrb[0].mxu0
    %698 = vmatprep.mubr.bf16.mxu0 0
    %699 = vmatmul.mubr.bf16.gmra.mrb[0].mxu0 %v495
    %v700 = vpop.f32.mrb[0].mxu0
    %v701 = vadd.f32 %v385, %v700
    %v702 = vpop.f32.mrb[0].mxu0
    %v703 = vpop.f32.mrb[0].mxu0
    %v704 = vadd.f32 %v389, %v703
    %v705 = vpop.f32.mrb[0].mxu0
    %706 = vmatprep.mubr.bf16.mxu0 0
    %707 = vmatmul.mubr.bf16.gmra.mrb[0].mxu0 %v496
    %v708 = vpop.f32.mrb[0].mxu0
    %v709 = vadd.f32 %v395, %v708
    %v710 = vpop.f32.mrb[0].mxu0
    %v711 = vpop.f32.mrb[0].mxu0
    %v712 = vadd.f32 %v399, %v711
    %v713 = vpop.f32.mrb[0].mxu0
    %714 = vmatprep.mubr.bf16.mxu0 0
    %715 = vmatmul.mubr.bf16.gmra.mrb[0].mxu0 %v497
    %v716 = vpop.f32.mrb[0].mxu0
    %v717 = vadd.f32 %v405, %v716
    %v718 = vpop.f32.mrb[0].mxu0
    %v719 = vpop.f32.mrb[0].mxu0
    %v720 = vadd.f32 %v409, %v719
    %v721 = vpop.f32.mrb[0].mxu0
    %722 = vdwg.mxu0
    %v723 = vld [vmem:[%s4] sm:$0x1]
    %v725 = vlaneseq
    %v726 = vshrl.u32 %v725, 7
    %v727 = vsub.s32 0, %v726
    %v728 = vrot.slane %v723, %v727
    %v730 = vadd.f32 %v597, %v728
    %v731 = vadd.f32 %v600, %v728
    %v732 = vadd.f32 %v605, %v728
    %v733 = vadd.f32 %v608, %v728
    %v734 = vadd.f32 %v613, %v728
    %v735 = vadd.f32 %v616, %v728
    %v736 = vadd.f32 %v621, %v728
    %v737 = vadd.f32 %v624, %v728
    %v738 = vadd.f32 %v629, %v728
    %v739 = vadd.f32 %v632, %v728
    %v740 = vadd.f32 %v637, %v728
    %v741 = vadd.f32 %v640, %v728
    %v742 = vadd.f32 %v645, %v728
    %v743 = vadd.f32 %v648, %v728
    %v744 = vadd.f32 %v653, %v728
    %v745 = vadd.f32 %v656, %v728
    %v746 = vadd.f32 %v661, %v728
    %v747 = vadd.f32 %v664, %v728
    %v748 = vadd.f32 %v669, %v728
    %v749 = vadd.f32 %v672, %v728
    %v750 = vadd.f32 %v677, %v728
    %v751 = vadd.f32 %v680, %v728
    %v752 = vadd.f32 %v685, %v728
    %v753 = vadd.f32 %v688, %v728
    %v754 = vadd.f32 %v693, %v728
    %v755 = vadd.f32 %v696, %v728
    %v756 = vadd.f32 %v701, %v728
    %v757 = vadd.f32 %v704, %v728
    %v758 = vadd.f32 %v709, %v728
    %v759 = vadd.f32 %v712, %v728
    %v760 = vadd.f32 %v717, %v728
    %v761 = vadd.f32 %v720, %v728
    %v762 = vmax.f32 %v730, 0.0
    %v763 = vmax.f32 %v731, 0.0
    %v764 = vmax.f32 %v732, 0.0
    %v765 = vmax.f32 %v733, 0.0
    %v766 = vmax.f32 %v734, 0.0
    %v767 = vmax.f32 %v735, 0.0
    %v768 = vmax.f32 %v736, 0.0
    %v769 = vmax.f32 %v737, 0.0
    %v770 = vmax.f32 %v738, 0.0
    %v771 = vmax.f32 %v739, 0.0
    %v772 = vmax.f32 %v740, 0.0
    %v773 = vmax.f32 %v741, 0.0
    %v774 = vmax.f32 %v742, 0.0
    %v775 = vmax.f32 %v743, 0.0
    %v776 = vmax.f32 %v744, 0.0
    %v777 = vmax.f32 %v745, 0.0
    %v778 = vmax.f32 %v746, 0.0
    %v779 = vmax.f32 %v747, 0.0
    %v780 = vmax.f32 %v748, 0.0
    %v781 = vmax.f32 %v749, 0.0
    %v782 = vmax.f32 %v750, 0.0
    %v783 = vmax.f32 %v751, 0.0
    %v784 = vmax.f32 %v752, 0.0
    %v785 = vmax.f32 %v753, 0.0
    %v786 = vmax.f32 %v754, 0.0
    %v787 = vmax.f32 %v755, 0.0
    %v788 = vmax.f32 %v756, 0.0
    %v789 = vmax.f32 %v757, 0.0
    %v790 = vmax.f32 %v758, 0.0
    %v791 = vmax.f32 %v759, 0.0
    %v792 = vmax.f32 %v760, 0.0
    %v793 = vmax.f32 %v761, 0.0
    %v794 = vld [vmem:[%s5] sm:$0x1]
    %v795 = vpack.c.bf16 %v763, %v762
    %v796 = vpack.c.bf16 %v765, %v764
    %v797 = vpack.c.bf16 %v767, %v766
    %v798 = vpack.c.bf16 %v769, %v768
    %v799 = vpack.c.bf16 %v771, %v770
    %v800 = vpack.c.bf16 %v773, %v772
    %v801 = vpack.c.bf16 %v775, %v774
    %v802 = vpack.c.bf16 %v777, %v776
    %v803 = vpack.c.bf16 %v779, %v778
    %v804 = vpack.c.bf16 %v781, %v780
    %v805 = vpack.c.bf16 %v783, %v782
    %v806 = vpack.c.bf16 %v785, %v784
    %v807 = vpack.c.bf16 %v787, %v786
    %v808 = vpack.c.bf16 %v789, %v788
    %v809 = vpack.c.bf16 %v791, %v790
    %v810 = vpack.c.bf16 %v793, %v792
    %s811 = sld [smem:[#allocation2]]
    %v812 = vstv %s811
    %813 = vmatprep.subr.bf16.mxu0 0
    %814 = vmatpush1.bf16.xpose.msra.mxu0 %v795
    %815 = vmatprep.subr.bf16.mxu0 0
    %816 = vmatpush1.bf16.xpose.msra.mxu0 %v796
    %817 = vmatprep.subr.bf16.mxu0 0
    %818 = vmatpush1.bf16.xpose.msra.mxu0 %v797
    %819 = vmatprep.subr.bf16.mxu0 0
    %820 = vmatpush1.bf16.xpose.msra.mxu0 %v798
    %821 = vmatprep.subr.bf16.mxu0 0
    %822 = vmatpush1.bf16.xpose.msra.mxu0 %v799
    %823 = vmatprep.subr.bf16.mxu0 0
    %824 = vmatpush1.bf16.xpose.msra.mxu0 %v800
    %825 = vmatprep.subr.bf16.mxu0 0
    %826 = vmatpush1.bf16.xpose.msra.mxu0 %v801
    %827 = vmatprep.subr.bf16.mxu0 0
    %828 = vmatpush1.bf16.xpose.msra.mxu0 %v802
    %829 = vmatprep.subr.bf16.mxu0 0
    %830 = vmatpush1.bf16.xpose.msra.mxu0 %v803
    %831 = vmatprep.subr.bf16.mxu0 0
    %832 = vmatpush1.bf16.xpose.msra.mxu0 %v804
    %833 = vmatprep.subr.bf16.mxu0 0
    %834 = vmatpush1.bf16.xpose.msra.mxu0 %v805
    %835 = vmatprep.subr.bf16.mxu0 0
    %836 = vmatpush1.bf16.xpose.msra.mxu0 %v806
    %837 = vmatprep.subr.bf16.mxu0 0
    %838 = vmatpush1.bf16.xpose.msra.mxu0 %v807
    %839 = vmatprep.subr.bf16.mxu0 0
    %840 = vmatpush1.bf16.xpose.msra.mxu0 %v808
    %841 = vmatprep.subr.bf16.mxu0 0
    %842 = vmatpush1.bf16.xpose.msra.mxu0 %v809
    %843 = vmatprep.subr.bf16.mxu0 0
    %844 = vmatpush1.bf16.xpose.msra.mxu0 %v810
    %845 = vmatprep.mubr.bf16.mxu0 0
    %846 = vmatmul.mubr.bf16.gmra.mrb[0].mxu0 %v794
    %v847 = vpop.f32.mrb[0].mxu0
    %v848 = vadd.f32 %v812, %v847
    %v849 = vpop.f32.mrb[0].mxu0
    %v850 = vadd.f32 %v812, %v849
    %v851 = vpop.f32.mrb[0].mxu0
    %v852 = vpop.f32.mrb[0].mxu0
    %853 = vdwg.mxu0
    %v856 = vcombine.low %v848, %v850
    %v858 = vunpack.c.l.s4 1966171168
    %v859 = vunpack.c.0.s8 %v858
    %v860 = vlaneseq
    %v861 = vshrl.u32 %v860, 7
    %v862 = vsub.s32 %v859, %v861
    %v863 = vrot.slane %v856, %v862
    %v865 = vunpack.c.l.s4 1966171168
    %v866 = vunpack.c.0.s8 %v865
    %v867 = vlaneseq
    %v868 = vshrl.u32 %v867, 7
    %v869 = vsub.s32 %v866, %v868
    %v870 = vrot.slane %v863, %v869
    %v872 = vlaneseq
    %vm873 = vcmp.ge.s32.totalorder %v872, 0
    %vm874 = vcmp.lt.s32.totalorder %v872, 256
    %vm875 = vmand %vm873, %vm874
    %876 = vst.msk [vmem:[#allocation3] sm:$0x3] %vm875, %v870
    // Predicated region
    $region30: #{tpu_custom_call.1} parent=1 // pred_check
      _
    $region31: #{tpu_custom_call.1} parent=1 // pred_check_branch
      %878 = sbr.rel (0) target = $region33
    $region32: #{tpu_custom_call.1} parent=1 // pred_region
      %s880 = ssub.s32 32, 32
      %881 = vsyncadd [#allocation4], %s880
      %s883 = sshll.u32 [#allocation3], 4
      %s884 = int_to_ptr.vmem [resolvable:$true] %s883
      %886 = dma.vmem_to_hbm [thread:$0]  %s884, 32, %s7, [#allocation4]
    $region33: #{tpu_custom_call.1} parent=1 // pred_fallthru
      _
    // Predicated region
    $region34: #{tpu_custom_call.1} parent=1 // pred_check
      _
    $region35: #{tpu_custom_call.1} parent=1 // pred_check_branch
      %888 = sbr.rel (0) target = $region37
    $region36: #{tpu_custom_call.1} parent=1 // pred_region
      %889 = dma.done [#allocation4], 32
    $region37: #{tpu_custom_call.1} parent=1 // pred_fallthru
      _
    %890 = vsyncpa [#allocation4], 1

</llo_original>
